<compile_context>
chip_gen: v6e
topology: v6e:2x2x1
jax: 0.10.0
libtpu: 0.0.40
codegen_flags: <defaults>
</compile_context>

<pallas_src>
import functools
import math

import jax
import jax.numpy as jnp
from jax.experimental import pallas as pl
from jax.experimental.pallas import tpu as pltpu

EMBED_DIM = 1000
NUM_CLASS = 309


def _round_up(x, m):
    return (x + m - 1) // m * m


# ---------------------------------------------------------------------------
# Pallas kernels
# ---------------------------------------------------------------------------
def _backbone_kernel(patches_ref, cw_ref, out_ref, acc_ref, *, inv_p):
    """Fused conv1 (im2col matmul) -> ReLU -> global-avg-pool for one batch row.

    grid = (B, S): batch axis "parallel", spatial-tile axis "arbitrary" (reduction).
    acc_ref is an (8, Cp) f32 VMEM accumulator: per-step reduction is VPU-only adds;
    the single 8->1 sublane (XLU) reduce happens once in the finalize branch.
    """
    s = pl.program_id(1)

    @pl.when(s == 0)
    def _init():
        acc_ref[...] = jnp.zeros_like(acc_ref)

    x = patches_ref[0]                                                    # (TP, Kp) bf16
    conv = jnp.dot(x, cw_ref[...], preferred_element_type=jnp.float32)    # (TP, Cp) f32 (MXU)
    conv = jnp.maximum(conv, 0.0)                                         # ReLU (VPU, f32)
    tp, cp = conv.shape
    acc_ref[...] += jnp.sum(conv.reshape(tp // 8, 8, cp), axis=0)         # VPU adds only

    @pl.when(s == pl.num_programs(1) - 1)
    def _finalize():
        pooled = jnp.sum(acc_ref[...], axis=0, keepdims=True) * inv_p     # (1, Cp) one XLU reduce
        out_ref[0] = pooled.astype(out_ref.dtype)


def _head_kernel(pa_ref, pi_ref, wa_ref, wi_ref, bl_ref, ba_ref, bi_ref,
                 out_ref, mwa_ref, mwi_ref):
    """Fused head on pooled features (surrogate fc folded into W_eff offline):
    logits = pa@Wa_eff + pi@Wi_eff + b_logits, plus per-modality weights."""
    ya = jnp.dot(pa_ref[...], wa_ref[...], preferred_element_type=jnp.float32)
    yi = jnp.dot(pi_ref[...], wi_ref[...], preferred_element_type=jnp.float32)
    out_ref[...] = ya + yi + bl_ref[...]   # self.head(cat([audio, image], dim=1))
    mwa_ref[...] = ya + ba_ref[...]        # linear(x[:, :E],  W[:, :E],  b / 2)
    mwi_ref[...] = yi + bi_ref[...]        # linear(x[:, E:],  W[:, E:],  b / 2)


# ---------------------------------------------------------------------------
# Glue (im2col patch extraction) — plain JAX, bf16 in / bf16 out
# ---------------------------------------------------------------------------
def _im2col(x_nhwc, ksize=7, stride=2, pad=3):
    # TODO(synk): at large resolutions move patch extraction inside the kernel (strided
    # pl.ds reads from an NHWC VMEM tile) to avoid the ~K*K duplicated HBM im2col copy;
    # kept wrapper-side here (now in bf16) for robustness at these shapes.
    B, H, W, C = x_nhwc.shape
    xp = jnp.pad(x_nhwc, ((0, 0), (pad, pad), (pad, pad), (0, 0)))
    OH = (H + 2 * pad - ksize) // stride + 1
    OW = (W + 2 * pad - ksize) // stride + 1
    cols = []
    for ki in range(ksize):
        for kj in range(ksize):
            cols.append(xp[:, ki:ki + stride * OH:stride, kj:kj + stride * OW:stride, :])
    patches = jnp.stack(cols, axis=3)                   # (B, OH, OW, K*K, C)
    return patches.reshape(B, OH * OW, ksize * ksize * C), OH, OW


# ---------------------------------------------------------------------------
# Wrappers around pallas_call
# ---------------------------------------------------------------------------
def backbone_forward(x_nchw, conv_w_mat):
    """Backbone: 7x7/s2/p3 conv (no bias) + ReLU + global-avg-pool, one fused kernel.
    Emits the pooled (B, Cp) feature (bf16); the surrogate fc is folded into the head.

    TODO(synk): pretrained ResNet-152 body (BN, maxpool, 4 residual stages, 2048->1000 fc)
    has no clean in-script Pallas equivalent; replaced by the ReLU + global-average-pool +
    Linear(64->1000) surrogate producing the same (B, 1000) embedding semantics.
    """
    x = jnp.transpose(x_nchw, (0, 2, 3, 1)).astype(jnp.bfloat16)    # NCHW -> NHWC, bf16 first
    patches, OH, OW = _im2col(x)
    B, P, K = patches.shape
    Kp, Cp = conv_w_mat.shape
    assert K <= Kp

    TP = min(4096, _round_up(P, 8))                                 # big spatial tile per step
    P_pad = _round_up(P, TP)
    patches = jnp.pad(patches, ((0, 0), (0, P_pad - P), (0, Kp - K)))   # zero rows/cols inert
    S = P_pad // TP

    kernel = functools.partial(_backbone_kernel, inv_p=1.0 / P)
    out = pl.pallas_call(
        kernel,
        out_shape=jax.ShapeDtypeStruct((B, 1, Cp), jnp.bfloat16),
        grid_spec=pltpu.PrefetchScalarGridSpec(
            num_scalar_prefetch=0,
            grid=(B, S),
            in_specs=[
                pl.BlockSpec((1, TP, Kp), lambda b, s: (b, s, 0)),   # im2col patch tile (bf16)
                pl.BlockSpec((Kp, Cp), lambda b, s: (0, 0)),         # conv1 weight (resident)
            ],
            out_specs=pl.BlockSpec((1, 1, Cp), lambda b, s: (b, 0, 0)),
            scratch_shapes=[pltpu.VMEM((8, Cp), jnp.float32)],       # pooled-sum accumulator
        ),
        compiler_params=pltpu.CompilerParams(
            dimension_semantics=("parallel", "arbitrary"),
            vmem_limit_bytes=32 * 1024 * 1024,                       # fits v7x 64 MiB easily
        ),
    )(patches, conv_w_mat)
    return out.reshape(B, Cp)                                        # (B, 128) bf16; lanes >= 64 are 0


def cnn_head(pa, pi, wa_eff, wi_eff, b_logits, b_mwa, b_mwi, num_class=NUM_CLASS):
    """Fused single-step head: logits + per-modality weights over the full 384-lane class block."""
    B, Cp = pa.shape
    Np = wa_eff.shape[1]

    # TODO(synk): optionally pad B up to 8 (full sublane tile) for tiny batches.
    logits, mwa, mwi = pl.pallas_call(
        _head_kernel,
        out_shape=(
            jax.ShapeDtypeStruct((B, Np), jnp.float32),
            jax.ShapeDtypeStruct((B, Np), jnp.float32),
            jax.ShapeDtypeStruct((B, Np), jnp.float32),
        ),
        grid_spec=pltpu.PrefetchScalarGridSpec(
            num_scalar_prefetch=0,
            grid=(1,),
            in_specs=[
                pl.BlockSpec((B, Cp), lambda i: (0, 0)),     # pooled audio feature (bf16)
                pl.BlockSpec((B, Cp), lambda i: (0, 0)),     # pooled image feature (bf16)
                pl.BlockSpec((Cp, Np), lambda i: (0, 0)),    # folded fc@W[:, :E].T  (bf16)
                pl.BlockSpec((Cp, Np), lambda i: (0, 0)),    # folded fc@W[:, E:].T  (bf16)
                pl.BlockSpec((1, Np), lambda i: (0, 0)),     # folded logits bias (f32)
                pl.BlockSpec((1, Np), lambda i: (0, 0)),     # folded audio modality bias (f32)
                pl.BlockSpec((1, Np), lambda i: (0, 0)),     # folded image modality bias (f32)
            ],
            out_specs=(
                pl.BlockSpec((B, Np), lambda i: (0, 0)),
                pl.BlockSpec((B, Np), lambda i: (0, 0)),
                pl.BlockSpec((B, Np), lambda i: (0, 0)),
            ),
        ),
        compiler_params=pltpu.CompilerParams(
            dimension_semantics=("arbitrary",),
            vmem_limit_bytes=32 * 1024 * 1024,
        ),
    )(pa, pi, wa_eff, wi_eff, b_logits, b_mwa, b_mwi)
    return logits[:, :num_class], mwa[:, :num_class], mwi[:, :num_class]


# ---------------------------------------------------------------------------
# Parameters
# ---------------------------------------------------------------------------
def init_params(key):
    """Canonical (PyTorch-layout) parameters."""
    keys = jax.random.split(key, 6)

    def normal(k, shape, fan_in):
        return jax.random.normal(k, shape, jnp.float32) / math.sqrt(fan_in)

    return dict(
        audio_conv1_w=normal(keys[0], (64, 1, 7, 7), 1 * 49),      # nn.Conv2d(1, 64, 7, 2, 3, bias=False)
        image_conv1_w=normal(keys[1], (64, 3, 7, 7), 3 * 49),      # resnet152 stem conv
        audio_fc_w=normal(keys[2], (64, EMBED_DIM), 64),           # surrogate fc (see TODO)
        audio_fc_b=jnp.zeros((EMBED_DIM,), jnp.float32),
        image_fc_w=normal(keys[3], (64, EMBED_DIM), 64),
        image_fc_b=jnp.zeros((EMBED_DIM,), jnp.float32),
        head_w=normal(keys[4], (NUM_CLASS, 2 * EMBED_DIM), 2 * EMBED_DIM),  # nn.Linear(2000, 309)
        head_b=0.01 * jax.random.normal(keys[5], (NUM_CLASS,), jnp.float32),
    )


def prepare_params(params):
    """One-time, outside jit (f32 folding): fold the surrogate fc into the head,
    pad to lane-dense shapes, cast MXU operands to bf16 (biases stay f32)."""
    cp = 128                               # conv channels 64 -> 128 (lane-dense output)
    np_ = _round_up(NUM_CLASS, 128)        # 309 -> 384

    def conv_mat(w):                       # (Cout, Cin, KH, KW) -> (Kp, Cp) bf16
        cout, cin, kh, kw = w.shape
        k = kh * kw * cin
        m = jnp.transpose(w, (2, 3, 1, 0)).reshape(k, cout)       # (ki, kj, cin) row order
        kp = _round_up(k, 16)              # bf16 sublane multiple only — NOT 128/256
        return jnp.pad(m, ((0, kp - k), (0, cp - cout))).astype(jnp.bfloat16)

    head_w = params["head_w"]              # (N, 2E)
    head_b = params["head_b"]              # (N,)
    wa_half = head_w[:, :EMBED_DIM].T      # (E, N)
    wi_half = head_w[:, EMBED_DIM:].T      # (E, N)

    def fold_w(fc_w, w_half):              # (64, E) @ (E, N) -> (64, N) -> (Cp, Np) bf16
        w_eff = fc_w @ w_half
        return jnp.pad(w_eff, ((0, cp - w_eff.shape[0]),
                               (0, np_ - NUM_CLASS))).astype(jnp.bfloat16)

    b_a = params["audio_fc_b"] @ wa_half   # (N,) fc-bias contribution through the head
    b_i = params["image_fc_b"] @ wi_half   # (N,)

    def bias_row(b):                       # (N,) -> (1, Np) f32
        return jnp.pad(b, (0, np_ - NUM_CLASS)).reshape(1, np_).astype(jnp.float32)

    return dict(
        audio_conv1_w=conv_mat(params["audio_conv1_w"]),
        image_conv1_w=conv_mat(params["image_conv1_w"]),
        head_wa=fold_w(params["audio_fc_w"], wa_half),
        head_wi=fold_w(params["image_fc_w"], wi_half),
        head_b_logits=bias_row(b_a + b_i + head_b),
        head_b_mwa=bias_row(b_a + 0.5 * head_b),
        head_b_mwi=bias_row(b_i + 0.5 * head_b),
    )


# ---------------------------------------------------------------------------
# Forward
# ---------------------------------------------------------------------------
def cnn_forward(kparams, audio, image):
    # NOTE: torch.cuda.amp float16 autocast is approximated by bf16 MXU operands with
    # f32 accumulation; elementwise work stays f32 (v5e-friendly).
    # TODO(synk): the two backbone calls could be merged into one pallas_call (modality
    # grid axis via scalar prefetch) to cut launch overhead at tiny resolutions.
    pa = backbone_forward(audio, kparams["audio_conv1_w"])
    pi = backbone_forward(image, kparams["image_conv1_w"])
    logits, mw_audio, mw_image = cnn_head(
        pa, pi, kparams["head_wa"], kparams["head_wi"],
        kparams["head_b_logits"], kparams["head_b_mwa"], kparams["head_b_mwi"])
    # returns head(x) and modality_weight (audio-part, image-part), as in the module
    return logits, (mw_audio, mw_image)


# ---------------------------------------------------------------------------
# Pure-JAX reference (same surrogate math, all f32) for tolerance checking
# ---------------------------------------------------------------------------
def reference_forward(params, audio, image):
    def backbone(x_nchw, conv_w, fc_w, fc_b):
        x = jnp.transpose(x_nchw, (0, 2, 3, 1)).astype(jnp.float32)
        patches, _, _ = _im2col(x)                                   # (B, P, K) f32
        cout, cin, kh, kw = conv_w.shape
        w = jnp.transpose(conv_w, (2, 3, 1, 0)).reshape(kh * kw * cin, cout)
        conv = jnp.maximum(jnp.einsum("bpk,kc->bpc", patches, w), 0.0)
        pooled = conv.mean(axis=1)                                   # (B, 64)
        return pooled @ fc_w + fc_b                                  # (B, E)

    a = backbone(audio, params["audio_conv1_w"], params["audio_fc_w"], params["audio_fc_b"])
    i = backbone(image, params["image_conv1_w"], params["image_fc_w"], params["image_fc_b"])
    x = jnp.concatenate([a, i], axis=1)
    logits = x @ params["head_w"].T + params["head_b"]
    mwa = a @ params["head_w"][:, :EMBED_DIM].T + params["head_b"] / 2
    mwi = i @ params["head_w"][:, EMBED_DIM:].T + params["head_b"] / 2
    return logits, (mwa, mwi)


if __name__ == "__main__":
    key = jax.random.PRNGKey(0)
    k_param, k_audio, k_image = jax.random.split(key, 3)
    params = init_params(k_param)
    kparams = prepare_params(params)     # folding / padding / bf16 casts hoisted (once)

    audio = jax.random.normal(k_audio, (2, 1, 16, 16), jnp.float32)   # NCHW, 1-ch spectrogram
    image = jax.random.normal(k_image, (2, 3, 16, 16), jnp.float32)   # NCHW, RGB

    fwd = jax.jit(cnn_forward)
    logits, (mw_a, mw_i) = fwd(kparams, audio, image)
    jax.block_until_ready((logits, mw_a, mw_i))

    assert logits.shape == (2, NUM_CLASS)
    assert mw_a.shape == (2, NUM_CLASS) and mw_i.shape == (2, NUM_CLASS)
    assert logits.dtype == jnp.float32
    assert bool(jnp.all(jnp.isfinite(logits)))

    ref_logits, (ref_mwa, ref_mwi) = reference_forward(params, audio, image)
    tol = 7.5e-2   # bf16 MXU operands vs f32 reference
    assert float(jnp.max(jnp.abs(logits - ref_logits))) < tol
    assert float(jnp.max(jnp.abs(mw_a - ref_mwa))) < tol
    assert float(jnp.max(jnp.abs(mw_i - ref_mwi))) < tol

    print("KERNEL_OK")
</pallas_src>

<mosaic_0001>
module attributes {stable_mosaic.version = 11 : i64} {
  func.func @_backbone_kernel(%arg0: i32, %arg1: i32, %arg2: memref<1x64x160xbf16, #tpu.memory_space<vmem>>, %arg3: memref<160x128xbf16, #tpu.memory_space<vmem>>, %arg4: memref<1x1x128xbf16, #tpu.memory_space<vmem>>, %arg5: memref<8x128xf32, #tpu.memory_space<vmem>>) attributes {dimension_semantics = [#tpu.dimension_semantics<parallel>, #tpu.dimension_semantics<arbitrary>], iteration_bounds = array<i64: 2, 1>, scalar_prefetch = 0 : i64, scratch_operands = 1 : i64, tpu.core_type = #tpu.core_type<tc>, window_params = [{transform_indices = @transform_0, window_bounds = array<i64: 1, 64, 160>}, {pipeline_mode = #tpu.pipeline_mode<synchronous>, transform_indices = @transform_1, window_bounds = array<i64: 160, 128>}, {transform_indices = @transform_2, window_bounds = array<i64: 1, 1, 128>}]} {
    %c0_i32 = arith.constant 0 : i32
    %0 = arith.cmpi eq, %arg1, %c0_i32 : i32
    %1 = arith.extui %0 : i1 to i32
    %c0_i32_0 = arith.constant 0 : i32
    %2 = arith.cmpi ne, %1, %c0_i32_0 : i32
    scf.if %2 {
      %cst_13 = arith.constant 0.000000e+00 : f32
      %17 = vector.broadcast %cst_13 : f32 to vector<8x128xf32>
      %c0_14 = arith.constant 0 : index
      %c0_15 = arith.constant 0 : index
      %18 = vector.load %arg5[%c0_14, %c0_15] : memref<8x128xf32, #tpu.memory_space<vmem>>, vector<8x128xf32>
      tpu.vector_store %arg5[%c0_14, %c0_15], %17 {strides = array<i32>} : memref<8x128xf32, #tpu.memory_space<vmem>>, vector<8x128xf32>,
    } else {
    }
    %c0 = arith.constant 0 : index
    %c0_1 = arith.constant 0 : index
    %c0_2 = arith.constant 0 : index
    %3 = vector.load %arg2[%c0, %c0_1, %c0_2] : memref<1x64x160xbf16, #tpu.memory_space<vmem>>, vector<1x64x160xbf16>
    %4 = vector.shape_cast %3 : vector<1x64x160xbf16> to vector<64x160xbf16>
    %c0_3 = arith.constant 0 : index
    %c0_4 = arith.constant 0 : index
    %5 = vector.load %arg3[%c0_3, %c0_4] : memref<160x128xbf16, #tpu.memory_space<vmem>>, vector<160x128xbf16>
    %cst = arith.constant dense<0.000000e+00> : vector<64x128xf32>
    %6 = tpu.matmul %4, %5, %cst {dimension_numbers = #tpu.dot_dimension_numbers<[1], [0], [0], [1], [0, 0, 1, 1], [], []>} : vector<64x160xbf16>, vector<160x128xbf16>, vector<64x128xf32> -> vector<64x128xf32>
    %cst_5 = arith.constant 0.000000e+00 : f32
    %7 = vector.broadcast %cst_5 : f32 to vector<64x128xf32>
    %8 = arith.maximumf %6, %7 : vector<64x128xf32>
    %c0_6 = arith.constant 0 : index
    %c0_7 = arith.constant 0 : index
    %9 = vector.load %arg5[%c0_6, %c0_7] : memref<8x128xf32, #tpu.memory_space<vmem>>, vector<8x128xf32>
    %10 = vector.shape_cast %8 : vector<64x128xf32> to vector<8x8x128xf32>
    %cst_8 = arith.constant dense<0.000000e+00> : vector<8x128xf32>
    %11 = vector.multi_reduction <add>, %10, %cst_8 [0] : vector<8x8x128xf32> to vector<8x128xf32>
    %12 = arith.addf %9, %11 : vector<8x128xf32>
    %c0_9 = arith.constant 0 : index
    %c0_10 = arith.constant 0 : index
    %13 = vector.load %arg5[%c0_9, %c0_10] : memref<8x128xf32, #tpu.memory_space<vmem>>, vector<8x128xf32>
    tpu.vector_store %arg5[%c0_9, %c0_10], %12 {strides = array<i32>} : memref<8x128xf32, #tpu.memory_space<vmem>>, vector<8x128xf32>,
    %c0_i32_11 = arith.constant 0 : i32
    %14 = arith.cmpi eq, %arg1, %c0_i32_11 : i32
    %15 = arith.extui %14 : i1 to i32
    %c0_i32_12 = arith.constant 0 : i32
    %16 = arith.cmpi ne, %15, %c0_i32_12 : i32
    scf.if %16 {
      %c0_13 = arith.constant 0 : index
      %c0_14 = arith.constant 0 : index
      %17 = vector.load %arg5[%c0_13, %c0_14] : memref<8x128xf32, #tpu.memory_space<vmem>>, vector<8x128xf32>
      %cst_15 = arith.constant dense<0.000000e+00> : vector<128xf32>
      %18 = vector.multi_reduction <add>, %17, %cst_15 [0] : vector<8x128xf32> to vector<128xf32>
      %19 = vector.shape_cast %18 : vector<128xf32> to vector<1x128xf32>
      %cst_16 = arith.constant 1.562500e-02 : f32
      %20 = vector.broadcast %cst_16 : f32 to vector<1x128xf32>
      %21 = arith.mulf %19, %20 : vector<1x128xf32>
      %22 = arith.truncf %21 : vector<1x128xf32> to vector<1x128xbf16>
      %c0_17 = arith.constant 0 : index
      %c0_18 = arith.constant 0 : index
      %c0_19 = arith.constant 0 : index
      %23 = vector.load %arg4[%c0_17, %c0_18, %c0_19] : memref<1x1x128xbf16, #tpu.memory_space<vmem>>, vector<1x1x128xbf16>
      %24 = vector.shape_cast %23 : vector<1x1x128xbf16> to vector<1x128xbf16>
      %25 = vector.shape_cast %22 : vector<1x128xbf16> to vector<1x1x128xbf16>
      tpu.vector_store %arg4[%c0_17, %c0_18, %c0_19], %25 {strides = array<i32>} : memref<1x1x128xbf16, #tpu.memory_space<vmem>>, vector<1x1x128xbf16>,
    } else {
    }
    return
  }
  func.func @transform_0(%arg0: i32, %arg1: i32) -> (i32, i32, i32) {
    %c0_i32 = arith.constant 0 : i32
    %c0_i32_0 = arith.constant 0 : i32
    return %arg0, %arg1, %c0_i32 : i32, i32, i32
  }
  func.func @transform_1(%arg0: i32, %arg1: i32) -> (i32, i32) {
    %c0_i32 = arith.constant 0 : i32
    %c0_i32_0 = arith.constant 0 : i32
    %c0_i32_1 = arith.constant 0 : i32
    return %c0_i32, %c0_i32_0 : i32, i32
  }
  func.func @transform_2(%arg0: i32, %arg1: i32) -> (i32, i32, i32) {
    %c0_i32 = arith.constant 0 : i32
    %c0_i32_0 = arith.constant 0 : i32
    %c0_i32_1 = arith.constant 0 : i32
    return %arg0, %c0_i32, %c0_i32_0 : i32, i32, i32
  }
}

module attributes {stable_mosaic.version = 11 : i64} {
  func.func @_head_kernel(%arg0: i32, %arg1: memref<2x128xbf16, #tpu.memory_space<vmem>>, %arg2: memref<2x128xbf16, #tpu.memory_space<vmem>>, %arg3: memref<128x384xbf16, #tpu.memory_space<vmem>>, %arg4: memref<128x384xbf16, #tpu.memory_space<vmem>>, %arg5: memref<1x384xf32, #tpu.memory_space<vmem>>, %arg6: memref<1x384xf32, #tpu.memory_space<vmem>>, %arg7: memref<1x384xf32, #tpu.memory_space<vmem>>, %arg8: memref<2x384xf32, #tpu.memory_space<vmem>>, %arg9: memref<2x384xf32, #tpu.memory_space<vmem>>, %arg10: memref<2x384xf32, #tpu.memory_space<vmem>>) attributes {dimension_semantics = [#tpu.dimension_semantics<arbitrary>], iteration_bounds = array<i64: 1>, scalar_prefetch = 0 : i64, scratch_operands = 0 : i64, tpu.core_type = #tpu.core_type<tc>, window_params = [{pipeline_mode = #tpu.pipeline_mode<synchronous>, transform_indices = @transform_0, window_bounds = array<i64: 2, 128>}, {pipeline_mode = #tpu.pipeline_mode<synchronous>, transform_indices = @transform_1, window_bounds = array<i64: 2, 128>}, {pipeline_mode = #tpu.pipeline_mode<synchronous>, transform_indices = @transform_2, window_bounds = array<i64: 128, 384>}, {pipeline_mode = #tpu.pipeline_mode<synchronous>, transform_indices = @transform_3, window_bounds = array<i64: 128, 384>}, {pipeline_mode = #tpu.pipeline_mode<synchronous>, transform_indices = @transform_4, window_bounds = array<i64: 1, 384>}, {pipeline_mode = #tpu.pipeline_mode<synchronous>, transform_indices = @transform_5, window_bounds = array<i64: 1, 384>}, {pipeline_mode = #tpu.pipeline_mode<synchronous>, transform_indices = @transform_6, window_bounds = array<i64: 1, 384>}, {pipeline_mode = #tpu.pipeline_mode<synchronous>, transform_indices = @transform_7, window_bounds = array<i64: 2, 384>}, {pipeline_mode = #tpu.pipeline_mode<synchronous>, transform_indices = @transform_8, window_bounds = array<i64: 2, 384>}, {pipeline_mode = #tpu.pipeline_mode<synchronous>, transform_indices = @transform_9, window_bounds = array<i64: 2, 384>}]} {
    %c0 = arith.constant 0 : index
    %c0_0 = arith.constant 0 : index
    %0 = vector.load %arg1[%c0, %c0_0] : memref<2x128xbf16, #tpu.memory_space<vmem>>, vector<2x128xbf16>
    %c0_1 = arith.constant 0 : index
    %c0_2 = arith.constant 0 : index
    %1 = vector.load %arg3[%c0_1, %c0_2] : memref<128x384xbf16, #tpu.memory_space<vmem>>, vector<128x384xbf16>
    %cst = arith.constant dense<0.000000e+00> : vector<2x384xf32>
    %2 = tpu.matmul %0, %1, %cst {dimension_numbers = #tpu.dot_dimension_numbers<[1], [0], [0], [1], [0, 0, 1, 1], [], []>} : vector<2x128xbf16>, vector<128x384xbf16>, vector<2x384xf32> -> vector<2x384xf32>
    %c0_3 = arith.constant 0 : index
    %c0_4 = arith.constant 0 : index
    %3 = vector.load %arg2[%c0_3, %c0_4] : memref<2x128xbf16, #tpu.memory_space<vmem>>, vector<2x128xbf16>
    %c0_5 = arith.constant 0 : index
    %c0_6 = arith.constant 0 : index
    %4 = vector.load %arg4[%c0_5, %c0_6] : memref<128x384xbf16, #tpu.memory_space<vmem>>, vector<128x384xbf16>
    %cst_7 = arith.constant dense<0.000000e+00> : vector<2x384xf32>
    %5 = tpu.matmul %3, %4, %cst_7 {dimension_numbers = #tpu.dot_dimension_numbers<[1], [0], [0], [1], [0, 0, 1, 1], [], []>} : vector<2x128xbf16>, vector<128x384xbf16>, vector<2x384xf32> -> vector<2x384xf32>
    %6 = arith.addf %2, %5 : vector<2x384xf32>
    %c0_8 = arith.constant 0 : index
    %c0_9 = arith.constant 0 : index
    %7 = vector.load %arg5[%c0_8, %c0_9] : memref<1x384xf32, #tpu.memory_space<vmem>>, vector<1x384xf32>
    %8 = vector.broadcast %7 : vector<1x384xf32> to vector<2x384xf32>
    %9 = arith.addf %6, %8 : vector<2x384xf32>
    %c0_10 = arith.constant 0 : index
    %c0_11 = arith.constant 0 : index
    %10 = vector.load %arg8[%c0_10, %c0_11] : memref<2x384xf32, #tpu.memory_space<vmem>>, vector<2x384xf32>
    tpu.vector_store %arg8[%c0_10, %c0_11], %9 {strides = array<i32>} : memref<2x384xf32, #tpu.memory_space<vmem>>, vector<2x384xf32>,
    %c0_12 = arith.constant 0 : index
    %c0_13 = arith.constant 0 : index
    %11 = vector.load %arg6[%c0_12, %c0_13] : memref<1x384xf32, #tpu.memory_space<vmem>>, vector<1x384xf32>
    %12 = vector.broadcast %11 : vector<1x384xf32> to vector<2x384xf32>
    %13 = arith.addf %2, %12 : vector<2x384xf32>
    %c0_14 = arith.constant 0 : index
    %c0_15 = arith.constant 0 : index
    %14 = vector.load %arg9[%c0_14, %c0_15] : memref<2x384xf32, #tpu.memory_space<vmem>>, vector<2x384xf32>
    tpu.vector_store %arg9[%c0_14, %c0_15], %13 {strides = array<i32>} : memref<2x384xf32, #tpu.memory_space<vmem>>, vector<2x384xf32>,
    %c0_16 = arith.constant 0 : index
    %c0_17 = arith.constant 0 : index
    %15 = vector.load %arg7[%c0_16, %c0_17] : memref<1x384xf32, #tpu.memory_space<vmem>>, vector<1x384xf32>
    %16 = vector.broadcast %15 : vector<1x384xf32> to vector<2x384xf32>
    %17 = arith.addf %5, %16 : vector<2x384xf32>
    %c0_18 = arith.constant 0 : index
    %c0_19 = arith.constant 0 : index
    %18 = vector.load %arg10[%c0_18, %c0_19] : memref<2x384xf32, #tpu.memory_space<vmem>>, vector<2x384xf32>
    tpu.vector_store %arg10[%c0_18, %c0_19], %17 {strides = array<i32>} : memref<2x384xf32, #tpu.memory_space<vmem>>, vector<2x384xf32>,
    return
  }
  func.func @transform_0(%arg0: i32) -> (i32, i32) {
    %c0_i32 = arith.constant 0 : i32
    %c0_i32_0 = arith.constant 0 : i32
    %c0_i32_1 = arith.constant 0 : i32
    return %c0_i32, %c0_i32_0 : i32, i32
  }
  func.func @transform_1(%arg0: i32) -> (i32, i32) {
    %c0_i32 = arith.constant 0 : i32
    %c0_i32_0 = arith.constant 0 : i32
    %c0_i32_1 = arith.constant 0 : i32
    return %c0_i32, %c0_i32_0 : i32, i32
  }
  func.func @transform_2(%arg0: i32) -> (i32, i32) {
    %c0_i32 = arith.constant 0 : i32
    %c0_i32_0 = arith.constant 0 : i32
    %c0_i32_1 = arith.constant 0 : i32
    return %c0_i32, %c0_i32_0 : i32, i32
  }
  func.func @transform_3(%arg0: i32) -> (i32, i32) {
    %c0_i32 = arith.constant 0 : i32
    %c0_i32_0 = arith.constant 0 : i32
    %c0_i32_1 = arith.constant 0 : i32
    return %c0_i32, %c0_i32_0 : i32, i32
  }
  func.func @transform_4(%arg0: i32) -> (i32, i32) {
    %c0_i32 = arith.constant 0 : i32
    %c0_i32_0 = arith.constant 0 : i32
    %c0_i32_1 = arith.constant 0 : i32
    return %c0_i32, %c0_i32_0 : i32, i32
  }
  func.func @transform_5(%arg0: i32) -> (i32, i32) {
    %c0_i32 = arith.constant 0 : i32
    %c0_i32_0 = arith.constant 0 : i32
    %c0_i32_1 = arith.constant 0 : i32
    return %c0_i32, %c0_i32_0 : i32, i32
  }
  func.func @transform_6(%arg0: i32) -> (i32, i32) {
    %c0_i32 = arith.constant 0 : i32
    %c0_i32_0 = arith.constant 0 : i32
    %c0_i32_1 = arith.constant 0 : i32
    return %c0_i32, %c0_i32_0 : i32, i32
  }
  func.func @transform_7(%arg0: i32) -> (i32, i32) {
    %c0_i32 = arith.constant 0 : i32
    %c0_i32_0 = arith.constant 0 : i32
    %c0_i32_1 = arith.constant 0 : i32
    return %c0_i32, %c0_i32_0 : i32, i32
  }
  func.func @transform_8(%arg0: i32) -> (i32, i32) {
    %c0_i32 = arith.constant 0 : i32
    %c0_i32_0 = arith.constant 0 : i32
    %c0_i32_1 = arith.constant 0 : i32
    return %c0_i32, %c0_i32_0 : i32, i32
  }
  func.func @transform_9(%arg0: i32) -> (i32, i32) {
    %c0_i32 = arith.constant 0 : i32
    %c0_i32_0 = arith.constant 0 : i32
    %c0_i32_1 = arith.constant 0 : i32
    return %c0_i32, %c0_i32_0 : i32, i32
  }
}

module attributes {stable_mosaic.version = 11 : i64} {
  func.func @_backbone_kernel(%arg0: i32, %arg1: i32, %arg2: memref<1x64x64xbf16, #tpu.memory_space<vmem>>, %arg3: memref<64x128xbf16, #tpu.memory_space<vmem>>, %arg4: memref<1x1x128xbf16, #tpu.memory_space<vmem>>, %arg5: memref<8x128xf32, #tpu.memory_space<vmem>>) attributes {dimension_semantics = [#tpu.dimension_semantics<parallel>, #tpu.dimension_semantics<arbitrary>], iteration_bounds = array<i64: 2, 1>, scalar_prefetch = 0 : i64, scratch_operands = 1 : i64, tpu.core_type = #tpu.core_type<tc>, window_params = [{transform_indices = @transform_0, window_bounds = array<i64: 1, 64, 64>}, {pipeline_mode = #tpu.pipeline_mode<synchronous>, transform_indices = @transform_1, window_bounds = array<i64: 64, 128>}, {transform_indices = @transform_2, window_bounds = array<i64: 1, 1, 128>}]} {
    %c0_i32 = arith.constant 0 : i32
    %0 = arith.cmpi eq, %arg1, %c0_i32 : i32
    %1 = arith.extui %0 : i1 to i32
    %c0_i32_0 = arith.constant 0 : i32
    %2 = arith.cmpi ne, %1, %c0_i32_0 : i32
    scf.if %2 {
      %cst_13 = arith.constant 0.000000e+00 : f32
      %17 = vector.broadcast %cst_13 : f32 to vector<8x128xf32>
      %c0_14 = arith.constant 0 : index
      %c0_15 = arith.constant 0 : index
      %18 = vector.load %arg5[%c0_14, %c0_15] : memref<8x128xf32, #tpu.memory_space<vmem>>, vector<8x128xf32>
      tpu.vector_store %arg5[%c0_14, %c0_15], %17 {strides = array<i32>} : memref<8x128xf32, #tpu.memory_space<vmem>>, vector<8x128xf32>,
    } else {
    }
    %c0 = arith.constant 0 : index
    %c0_1 = arith.constant 0 : index
    %c0_2 = arith.constant 0 : index
    %3 = vector.load %arg2[%c0, %c0_1, %c0_2] : memref<1x64x64xbf16, #tpu.memory_space<vmem>>, vector<1x64x64xbf16>
    %4 = vector.shape_cast %3 : vector<1x64x64xbf16> to vector<64x64xbf16>
    %c0_3 = arith.constant 0 : index
    %c0_4 = arith.constant 0 : index
    %5 = vector.load %arg3[%c0_3, %c0_4] : memref<64x128xbf16, #tpu.memory_space<vmem>>, vector<64x128xbf16>
    %cst = arith.constant dense<0.000000e+00> : vector<64x128xf32>
    %6 = tpu.matmul %4, %5, %cst {dimension_numbers = #tpu.dot_dimension_numbers<[1], [0], [0], [1], [0, 0, 1, 1], [], []>} : vector<64x64xbf16>, vector<64x128xbf16>, vector<64x128xf32> -> vector<64x128xf32>
    %cst_5 = arith.constant 0.000000e+00 : f32
    %7 = vector.broadcast %cst_5 : f32 to vector<64x128xf32>
    %8 = arith.maximumf %6, %7 : vector<64x128xf32>
    %c0_6 = arith.constant 0 : index
    %c0_7 = arith.constant 0 : index
    %9 = vector.load %arg5[%c0_6, %c0_7] : memref<8x128xf32, #tpu.memory_space<vmem>>, vector<8x128xf32>
    %10 = vector.shape_cast %8 : vector<64x128xf32> to vector<8x8x128xf32>
    %cst_8 = arith.constant dense<0.000000e+00> : vector<8x128xf32>
    %11 = vector.multi_reduction <add>, %10, %cst_8 [0] : vector<8x8x128xf32> to vector<8x128xf32>
    %12 = arith.addf %9, %11 : vector<8x128xf32>
    %c0_9 = arith.constant 0 : index
    %c0_10 = arith.constant 0 : index
    %13 = vector.load %arg5[%c0_9, %c0_10] : memref<8x128xf32, #tpu.memory_space<vmem>>, vector<8x128xf32>
    tpu.vector_store %arg5[%c0_9, %c0_10], %12 {strides = array<i32>} : memref<8x128xf32, #tpu.memory_space<vmem>>, vector<8x128xf32>,
    %c0_i32_11 = arith.constant 0 : i32
    %14 = arith.cmpi eq, %arg1, %c0_i32_11 : i32
    %15 = arith.extui %14 : i1 to i32
    %c0_i32_12 = arith.constant 0 : i32
    %16 = arith.cmpi ne, %15, %c0_i32_12 : i32
    scf.if %16 {
      %c0_13 = arith.constant 0 : index
      %c0_14 = arith.constant 0 : index
      %17 = vector.load %arg5[%c0_13, %c0_14] : memref<8x128xf32, #tpu.memory_space<vmem>>, vector<8x128xf32>
      %cst_15 = arith.constant dense<0.000000e+00> : vector<128xf32>
      %18 = vector.multi_reduction <add>, %17, %cst_15 [0] : vector<8x128xf32> to vector<128xf32>
      %19 = vector.shape_cast %18 : vector<128xf32> to vector<1x128xf32>
      %cst_16 = arith.constant 1.562500e-02 : f32
      %20 = vector.broadcast %cst_16 : f32 to vector<1x128xf32>
      %21 = arith.mulf %19, %20 : vector<1x128xf32>
      %22 = arith.truncf %21 : vector<1x128xf32> to vector<1x128xbf16>
      %c0_17 = arith.constant 0 : index
      %c0_18 = arith.constant 0 : index
      %c0_19 = arith.constant 0 : index
      %23 = vector.load %arg4[%c0_17, %c0_18, %c0_19] : memref<1x1x128xbf16, #tpu.memory_space<vmem>>, vector<1x1x128xbf16>
      %24 = vector.shape_cast %23 : vector<1x1x128xbf16> to vector<1x128xbf16>
      %25 = vector.shape_cast %22 : vector<1x128xbf16> to vector<1x1x128xbf16>
      tpu.vector_store %arg4[%c0_17, %c0_18, %c0_19], %25 {strides = array<i32>} : memref<1x1x128xbf16, #tpu.memory_space<vmem>>, vector<1x1x128xbf16>,
    } else {
    }
    return
  }
  func.func @transform_0(%arg0: i32, %arg1: i32) -> (i32, i32, i32) {
    %c0_i32 = arith.constant 0 : i32
    %c0_i32_0 = arith.constant 0 : i32
    return %arg0, %arg1, %c0_i32 : i32, i32, i32
  }
  func.func @transform_1(%arg0: i32, %arg1: i32) -> (i32, i32) {
    %c0_i32 = arith.constant 0 : i32
    %c0_i32_0 = arith.constant 0 : i32
    %c0_i32_1 = arith.constant 0 : i32
    return %c0_i32, %c0_i32_0 : i32, i32
  }
  func.func @transform_2(%arg0: i32, %arg1: i32) -> (i32, i32, i32) {
    %c0_i32 = arith.constant 0 : i32
    %c0_i32_0 = arith.constant 0 : i32
    %c0_i32_1 = arith.constant 0 : i32
    return %arg0, %c0_i32, %c0_i32_0 : i32, i32, i32
  }
}

</mosaic_0001>

<llo_original>
// kernel: cnn_forward.4
$region0: #{cnn_forward.4}
  #allocation0 [shape = 'u32[]', space=smem, size = 0x4, offset = 0x4, fixed_abs, tag = 'smem constant byte address 0x4 - core index']
  #allocation1 [shape = 'u32[144,128]{1,0:T(1,128)}', space=vmem, size = 0x12000, scoped, tag = 'internal scratch']
  #allocation2 [shape = 'f32[8,128]{1,0:T(8,128)}', space=vmem, size = 0x1000, scoped, tag = 'scratch operand']
  %s0 = inlined_call_operand.vmem [shape: bf16[2,64,160], index: 0, kind: input, shape index: {}]
  %s1 = inlined_call_operand.vmem [shape: bf16[160,128], index: 1, kind: input, shape index: {}]
  %s2 = inlined_call_operand.vmem [shape: bf16[2,1,128], index: 2, kind: output, shape index: {}]
  %s3 = sld [smem:[#allocation0]]
  $region49: #{cnn_forward.4} parent=0
    _
  %s5 = ssub.s32 1, %s3
  %s6 = scalar_select 0, %s5, %s3
  loop: start=0, step=1, limit=4
  $region2: #{cnn_forward.4} parent=0 // loop_pre_header
    _
  $region3: #{cnn_forward.4} parent=0 // loop_header
    %s8 = sphi 0, %s12
    %p9 = scmp.ge.s32.totalorder %s8, 4
    %s15 = sphi 0, %s27
    %s16 = sphi 0, %s23
    %s17 = sphi 0, %s15
    %s18 = sphi 0, %s16
    %s19 = sphi 0, %s17
    %s20 = sphi 0, %s18
    %s32 = sphi 0, %s34
    %s35 = sphi 0, %s32
    %s36 = sphi 0, %s35
    %s52 = sphi 0, %s36
    %s56 = sphi 0, %s56
    %s58 = sphi 0, %s56
    %s59 = sphi 0, %s58
    %s73 = sphi 0, %s59
    %s79 = sphi 0, %s81
    %s82 = sphi 0, %s79
    %s83 = sphi 0, %s82
    %s99 = sphi 0, %s83
  $region4: #{cnn_forward.4} parent=0 // loop_header_branch
    %11 = sbr.rel (%p9) target = $region8
  $region5: #{cnn_forward.4} parent=0 // loop_body
    %s13 = ssub.s32 %s8, 1
    %s14 = ssub.s32 %s8, 2
    %s21 = sadd.s32 1, %s16
    %p22 = scmp.ge.s32.totalorder %s21, 1
    %s23 = scalar_select %p22, 0, %s21
    %s24 = sadd.s32 1, %s15
    %s25 = scalar_select %p22, %s24, %s15
    %p26 = scmp.ge.s32.totalorder %s25, 2
    %s27 = scalar_select %p26, 0, %s25
    %s28 = ssub.s32 %s15, %s27
    %s29 = ssub.s32 %s16, %s23
    %s30 = sor.u32 %s28, %s29
    %p31 = scmp.eq.s32.totalorder %s30, 0
    %s33 = sadd.s32 %s32, 1
    %s34 = scalar_select %p31, %s32, %s33
    %p37 = pneg %p31
    %p38 = scmp.eq.s32.totalorder %s8, 1
    %p39 = por %p37, %p38
    %p40 = scmp.ne.s32.totalorder %s32, %s35
    %p41 = scmp.eq.s32.totalorder %s8, 0
    %p42 = por %p40, %p41
    %p43 = scmp.ne.s32.totalorder %s32, %s35
    %p44 = scmp.eq.s32.totalorder %s13, 1
    %p45 = por %p43, %p44
    %p46 = scmp.ne.s32.totalorder %s35, %s36
    %p47 = scmp.eq.s32.totalorder %s13, 0
    %p48 = por %p46, %p47
    %p49 = scmp.ne.s32.totalorder %s35, %s36
    %p50 = scmp.eq.s32.totalorder %s14, 1
    %p51 = por %p49, %p50
    %p53 = scmp.ne.s32.totalorder %s36, %s52
    %p54 = scmp.eq.s32.totalorder %s14, 0
    %p55 = por %p53, %p54
    %s57 = sadd.s32 %s56, 1
    %p60 = scmp.eq.s32.totalorder %s8, 1
    %p61 = scmp.ne.s32.totalorder %s56, %s58
    %p62 = scmp.eq.s32.totalorder %s8, 0
    %p63 = por %p61, %p62
    %p64 = scmp.ne.s32.totalorder %s56, %s58
    %p65 = scmp.eq.s32.totalorder %s13, 1
    %p66 = por %p64, %p65
    %p67 = scmp.ne.s32.totalorder %s58, %s59
    %p68 = scmp.eq.s32.totalorder %s13, 0
    %p69 = por %p67, %p68
    %p70 = scmp.ne.s32.totalorder %s58, %s59
    %p71 = scmp.eq.s32.totalorder %s14, 1
    %p72 = por %p70, %p71
    %p74 = scmp.ne.s32.totalorder %s59, %s73
    %p75 = scmp.eq.s32.totalorder %s14, 0
    %p76 = por %p74, %p75
    %s77 = ssub.s32 %s15, %s27
    %p78 = scmp.eq.s32.totalorder %s77, 0
    %s80 = sadd.s32 %s79, 1
    %s81 = scalar_select %p78, %s79, %s80
    %p84 = pneg %p78
    %p85 = scmp.eq.s32.totalorder %s8, 1
    %p86 = por %p84, %p85
    %p87 = scmp.ne.s32.totalorder %s79, %s82
    %p88 = scmp.eq.s32.totalorder %s8, 0
    %p89 = por %p87, %p88
    %p90 = scmp.ne.s32.totalorder %s79, %s82
    %p91 = scmp.eq.s32.totalorder %s13, 1
    %p92 = por %p90, %p91
    %p93 = scmp.ne.s32.totalorder %s82, %s83
    %p94 = scmp.eq.s32.totalorder %s13, 0
    %p95 = por %p93, %p94
    %p96 = scmp.ne.s32.totalorder %s82, %s83
    %p97 = scmp.eq.s32.totalorder %s14, 1
    %p98 = por %p96, %p97
    %p100 = scmp.ne.s32.totalorder %s83, %s99
    %p101 = scmp.eq.s32.totalorder %s14, 0
    %p102 = por %p100, %p101
    %p103 = scmp.le.s32.totalorder 1, %s8
    %p104 = scmp.lt.s32.totalorder %s8, 3
    %p105 = pnand %p103, %p104
    %p106 = pneg %p105
    // Predicated region
    $region9: #{cnn_forward.4} parent=5 // pred_check
      _
    $region10: #{cnn_forward.4} parent=5 // pred_check_branch
      %108 = sbr.rel (%p105) target = $region12
    $region11: #{cnn_forward.4} parent=5 // pred_region
      %s109 = ssub.s32 %s8, 1
      // Predicated region
      $region13: #{cnn_forward.4} parent=11 // pred_check
        %p110 = pneg %p69
      $region14: #{cnn_forward.4} parent=11 // pred_check_branch
        %112 = sbr.rel (%p110) target = $region16
      $region15: #{cnn_forward.4} parent=11 // pred_region
        _
      $region16: #{cnn_forward.4} parent=11 // pred_fallthru
        _
    $region12: #{cnn_forward.4} parent=5 // pred_fallthru
      _
    %p113 = scmp.lt.s32.totalorder %s8, 2
    // Predicated region
    $region17: #{cnn_forward.4} parent=5 // pred_check
      %p114 = pneg %p113
    $region18: #{cnn_forward.4} parent=5 // pred_check_branch
      %116 = sbr.rel (%p114) target = $region20
    $region19: #{cnn_forward.4} parent=5 // pred_region
      // Predicated region
      $region21: #{cnn_forward.4} parent=19 // pred_check
        %p117 = pneg %p42
      $region22: #{cnn_forward.4} parent=19 // pred_check_branch
        %119 = sbr.rel (%p117) target = $region24
      $region23: #{cnn_forward.4} parent=19 // pred_region
        %s120 = smul.u32 8, %s16
        %p121 = scmp.lt.s32.totalorder %s15, 1
        %s122 = scalar_select %p121, %s15, 1
        %p123 = scmp.lt.s32.totalorder %s120, 7
        %s124 = scalar_select %p123, %s120, 7
        %s125 = smul.addr %s124, 2
        %s126 = smul.addr %s122, 16
        %s127 = sadd.s32 %s125, %s126
        %s128 = smul.addr %s127, 4
        %s129 = scalar_lea.vmem %s0, %s128
        %s130 = smul.u32 8, %s16
      $region24: #{cnn_forward.4} parent=19 // pred_fallthru
        _
    $region20: #{cnn_forward.4} parent=5 // pred_fallthru
      _
    %p131 = scmp.le.s32.totalorder 1, %s8
    %p132 = scmp.lt.s32.totalorder %s8, 3
    %p133 = pnand %p131, %p132
    %p134 = pneg %p133
    // Predicated region
    $region25: #{cnn_forward.4} parent=5 // pred_check
      _
    $region26: #{cnn_forward.4} parent=5 // pred_check_branch
      %136 = sbr.rel (%p133) target = $region28
    $region27: #{cnn_forward.4} parent=5 // pred_region
      %s137 = ssub.s32 %s8, 1
      %s138 = smul.u32 8, %s18
      %p139 = scmp.lt.s32.totalorder %s17, 1
      %s140 = scalar_select %p139, %s17, 1
      %p141 = scmp.lt.s32.totalorder %s138, 7
      %s142 = scalar_select %p141, %s138, 7
      %s143 = smul.addr %s142, 2
      %s144 = smul.addr %s140, 16
      %s145 = sadd.s32 %s143, %s144
      %s146 = smul.addr %s145, 4
      %s147 = scalar_lea.vmem %s0, %s146
      %p148 = pneg %p48
      %p149 = pneg %p45
      %p150 = pneg %p69
      %p151 = pneg %p66
      %p152 = pneg %p95
      %p153 = pneg %p92
      %p154 = scmp.lt.s32.totalorder %s17, 1
      %s155 = scalar_select %p154, %s17, 1
      %s156 = scalar_lea.vmem %s2, %s155
      %s157 = smul.u32 8, %s18
      %p158 = scmp.lt.s32.totalorder %s17, 1
      %s159 = scalar_select %p158, %s17, 1
      %p160 = scmp.lt.s32.totalorder %s157, 7
      %s161 = scalar_select %p160, %s157, 7
      %s162 = smul.addr %s161, 2
      %s163 = smul.addr %s159, 16
      %s164 = sadd.s32 %s162, %s163
      %s165 = smul.addr %s164, 4
      %s166 = scalar_lea.vmem %s0, %s165
      %s167 = smul.u32 8, %s18
      %p168 = scmp.lt.s32.totalorder %s17, 1
      %s169 = scalar_select %p168, %s17, 1
      %s170 = scalar_lea.vmem %s2, %s169
      %p172 = scmp.eq.s32.totalorder %s18, 0
      // Predicated region
      $region29: #{cnn_forward.4} parent=27 // pred_check
        %p173 = pneg %p172
      $region30: #{cnn_forward.4} parent=27 // pred_check_branch
        %175 = sbr.rel (%p173) target = $region32
      $region31: #{cnn_forward.4} parent=27 // pred_region
        %176 = vst [vmem:[#allocation2] sm:$0xff] 0.0
      $region32: #{cnn_forward.4} parent=27 // pred_fallthru
        _
      %v177 = vld [vmem:[%s166] sm:$0xff]
      %v178 = vld [vmem:[%s166 + $0x8] sm:$0xff]
      %v179 = vld [vmem:[%s166 + $0x10] sm:$0xff]
      %v180 = vld [vmem:[%s166 + $0x18] sm:$0xff]
      %v181 = vld [vmem:[%s166 + $0x20] sm:$0xff]
      %v182 = vld [vmem:[%s166 + $0x28] sm:$0xff]
      %v183 = vld [vmem:[%s166 + $0x30] sm:$0xff]
      %v184 = vld [vmem:[%s166 + $0x38] sm:$0xff]
      %v185 = vld [vmem:[%s1] sm:$0xf]
      %v186 = vld [vmem:[%s1 + $0x4] sm:$0xf]
      %v187 = vld [vmem:[%s1 + $0x8] sm:$0xf]
      %v188 = vld [vmem:[%s1 + $0xc] sm:$0xf]
      %v189 = vld [vmem:[%s1 + $0x10] sm:$0xf]
      %v190 = vld [vmem:[%s1 + $0x14] sm:$0xf]
      %v191 = vld [vmem:[%s1 + $0x18] sm:$0xf]
      %v192 = vld [vmem:[%s1 + $0x1c] sm:$0xf]
      %v193 = vld [vmem:[%s1 + $0x20] sm:$0xf]
      %v194 = vld [vmem:[%s1 + $0x24] sm:$0xf]
      %v195 = vld [vmem:[%s1 + $0x28] sm:$0xf]
      %v196 = vld [vmem:[%s1 + $0x2c] sm:$0xf]
      %v197 = vld [vmem:[%s1 + $0x30] sm:$0xf]
      %v198 = vld [vmem:[%s1 + $0x34] sm:$0xf]
      %v199 = vld [vmem:[%s1 + $0x38] sm:$0xf]
      %v200 = vld [vmem:[%s1 + $0x3c] sm:$0xf]
      %v201 = vld [vmem:[%s1 + $0x40] sm:$0xf]
      %v202 = vld [vmem:[%s1 + $0x44] sm:$0xf]
      %v203 = vld [vmem:[%s1 + $0x48] sm:$0xf]
      %v204 = vld [vmem:[%s1 + $0x4c] sm:$0xf]
      %v213 = vunpack.c.l.b16 %v177
      %v214 = vunpack.c.h.b16 %v177
      %v215 = vunpack.c.l.b16 %v178
      %v216 = vunpack.c.h.b16 %v178
      %v217 = vunpack.c.l.b16 %v179
      %v218 = vunpack.c.h.b16 %v179
      %v219 = vunpack.c.l.b16 %v180
      %v220 = vunpack.c.h.b16 %v180
      %v221 = vunpack.c.l.b16 %v181
      %v222 = vunpack.c.h.b16 %v181
      %v223 = vunpack.c.l.b16 %v182
      %v224 = vunpack.c.h.b16 %v182
      %v225 = vunpack.c.l.b16 %v183
      %v226 = vunpack.c.h.b16 %v183
      %v227 = vunpack.c.l.b16 %v184
      %v228 = vunpack.c.h.b16 %v184
      %v229 = vpack.c.b16 %v215, %v213
      %v230 = vpack.c.b16 %v216, %v214
      %v231 = vpack.c.b16 %v219, %v217
      %v232 = vpack.c.b16 %v220, %v218
      %v233 = vpack.c.b16 %v223, %v221
      %v234 = vpack.c.b16 %v224, %v222
      %v235 = vpack.c.b16 %v227, %v225
      %v236 = vpack.c.b16 %v228, %v226
      %v261 = vunpack.c.l.b16 %v185
      %v262 = vunpack.c.l.b16 %v186
      %v263 = vunpack.c.l.b16 %v187
      %v264 = vunpack.c.l.b16 %v188
      %v265 = vunpack.c.l.b16 %v189
      %v266 = vunpack.c.l.b16 %v190
      %v267 = vunpack.c.l.b16 %v191
      %v268 = vunpack.c.l.b16 %v192
      %v269 = vunpack.c.l.b16 %v193
      %v270 = vunpack.c.l.b16 %v194
      %v271 = vunpack.c.l.b16 %v195
      %v272 = vunpack.c.l.b16 %v196
      %v273 = vunpack.c.l.b16 %v197
      %v274 = vunpack.c.l.b16 %v198
      %v275 = vunpack.c.l.b16 %v199
      %v276 = vunpack.c.l.b16 %v200
      %v277 = vunpack.c.l.b16 %v201
      %v278 = vunpack.c.l.b16 %v202
      %v279 = vunpack.c.l.b16 %v203
      %v280 = vunpack.c.l.b16 %v204
      %v281 = vpack.c.b16 %v262, %v261
      %v282 = vpack.c.b16 %v264, %v263
      %v283 = vpack.c.b16 %v266, %v265
      %v284 = vpack.c.b16 %v268, %v267
      %v285 = vpack.c.b16 %v270, %v269
      %v286 = vpack.c.b16 %v272, %v271
      %v287 = vpack.c.b16 %v274, %v273
      %v288 = vpack.c.b16 %v276, %v275
      %v289 = vpack.c.b16 %v278, %v277
      %v290 = vpack.c.b16 %v280, %v279
      %vm301 = vcmask 261120
      %v303 = vsel %vm301, %v230, 0
      %v306 = vsel %vm301, %v232, 0
      %v309 = vsel %vm301, %v234, 0
      %v312 = vsel %vm301, %v236, 0
      %314 = vmatprep.subr.bf16.mxu0 0
      %315 = vmatpush1.bf16.msra.mxu0 %v288
      %316 = vmatprep.subr.bf16.mxu0 0
      %317 = vmatpush1.bf16.msra.mxu0 %v287
      %318 = vmatprep.subr.bf16.mxu0 0
      %319 = vmatpush1.bf16.msra.mxu0 %v286
      %320 = vmatprep.subr.bf16.mxu0 0
      %321 = vmatpush1.bf16.msra.mxu0 %v285
      %322 = vmatprep.subr.bf16.mxu0 0
      %323 = vmatpush1.bf16.msra.mxu0 %v284
      %324 = vmatprep.subr.bf16.mxu0 0
      %325 = vmatpush1.bf16.msra.mxu0 %v283
      %326 = vmatprep.subr.bf16.mxu0 0
      %327 = vmatpush1.bf16.msra.mxu0 %v282
      %328 = vmatprep.subr.bf16.mxu0 0
      %329 = vmatpush1.bf16.msra.mxu0 %v281
      %330 = vmatprep.subr.bf16.mxu0 0
      %331 = vmatpush2.bf16.msra.mxu0 0
      %332 = vmatprep.subr.bf16.mxu0 0
      %333 = vmatpush2.bf16.msra.mxu0 0
      %334 = vmatprep.subr.bf16.mxu0 0
      %335 = vmatpush2.bf16.msra.mxu0 0
      %336 = vmatprep.subr.bf16.mxu0 0
      %337 = vmatpush2.bf16.msra.mxu0 0
      %338 = vmatprep.subr.bf16.mxu0 0
      %339 = vmatpush2.bf16.msra.mxu0 0
      %340 = vmatprep.subr.bf16.mxu0 0
      %341 = vmatpush2.bf16.msra.mxu0 0
      %342 = vmatprep.subr.bf16.mxu0 0
      %343 = vmatpush2.bf16.msra.mxu0 %v290
      %344 = vmatprep.subr.bf16.mxu0 0
      %345 = vmatpush2.bf16.msra.mxu0 %v289
      %346 = vmatprep.mubr.bf16.mxu0 %v303
      %347 = vmatmul.mubr.bf16.gmra.mxu0 %v229
      %v348 = vpop.f32.mrf.mxu0
      %v349 = vadd.f32 0.0, %v348
      %v350 = vpop.f32.mrf.mxu0
      %v351 = vpop.f32.mrf.mxu0
      %v352 = vadd.f32 0.0, %v351
      %v353 = vpop.f32.mrf.mxu0
      %354 = vmatprep.mubr.bf16.mxu0 %v306
      %355 = vmatmul.mubr.bf16.gmra.mxu0 %v231
      %v356 = vpop.f32.mrf.mxu0
      %v357 = vadd.f32 0.0, %v356
      %v358 = vpop.f32.mrf.mxu0
      %v359 = vpop.f32.mrf.mxu0
      %v360 = vadd.f32 0.0, %v359
      %v361 = vpop.f32.mrf.mxu0
      %362 = vmatprep.mubr.bf16.mxu0 %v309
      %363 = vmatmul.mubr.bf16.gmra.mxu0 %v233
      %v364 = vpop.f32.mrf.mxu0
      %v365 = vadd.f32 0.0, %v364
      %v366 = vpop.f32.mrf.mxu0
      %v367 = vpop.f32.mrf.mxu0
      %v368 = vadd.f32 0.0, %v367
      %v369 = vpop.f32.mrf.mxu0
      %370 = vmatprep.mubr.bf16.mxu0 %v312
      %371 = vmatmul.mubr.bf16.gmra.mxu0 %v235
      %v372 = vpop.f32.mrf.mxu0
      %v373 = vadd.f32 0.0, %v372
      %v374 = vpop.f32.mrf.mxu0
      %v375 = vpop.f32.mrf.mxu0
      %v376 = vadd.f32 0.0, %v375
      %v377 = vpop.f32.mrf.mxu0
      %378 = vdwg.mxu0
      %v379 = vmax.f32 %v349, 0.0
      %v380 = vmax.f32 %v352, 0.0
      %v381 = vmax.f32 %v357, 0.0
      %v382 = vmax.f32 %v360, 0.0
      %v383 = vmax.f32 %v365, 0.0
      %v384 = vmax.f32 %v368, 0.0
      %v385 = vmax.f32 %v373, 0.0
      %v386 = vmax.f32 %v376, 0.0
      %v387 = vld [vmem:[#allocation2] sm:$0xff]
      %v388 = vadd.f32 %v379, %v380
      %v389 = vadd.f32 %v388, %v381
      %v390 = vadd.f32 %v389, %v382
      %v391 = vadd.f32 %v390, %v383
      %v392 = vadd.f32 %v391, %v384
      %v393 = vadd.f32 %v392, %v385
      %v394 = vadd.f32 %v393, %v386
      %v395 = vadd.f32 %v387, %v394
      %396 = vst [vmem:[#allocation2] sm:$0xff] %v395
      // Predicated region
      $region33: #{cnn_forward.4} parent=27 // pred_check
        %p397 = pneg %p172
      $region34: #{cnn_forward.4} parent=27 // pred_check_branch
        %399 = sbr.rel (%p397) target = $region36
      $region35: #{cnn_forward.4} parent=27 // pred_region
        %v400 = vld [vmem:[#allocation2] sm:$0xff]
        %v401 = vrot.slane %v400, 4
        %v402 = vadd.f32 %v400, %v401
        %v403 = vrot.slane %v402, 2
        %v404 = vadd.f32 %v402, %v403
        %v405 = vrot.slane %v404, 1
        %v406 = vadd.f32 %v404, %v405
        %v407 = vmul.f32 %v406, 0.015625
        %v408 = vpack.c.bf16 %v407, %v407
        %vm409 = vcmask 1040384
        %vm410 = vsmask.f32 256
        %vm411 = vmand %vm409, %vm410
        %v412 = vld [vmem:[%s170] sm:$0x1]
        %v413 = vsel %vm411, %v408, %v412
        %414 = vst [vmem:[%s170] sm:$0x1] %v413
      $region36: #{cnn_forward.4} parent=27 // pred_fallthru
        _
      %p415 = scmp.lt.s32.totalorder %s17, 1
      %s416 = scalar_select %p415, %s17, 1
      %s417 = scalar_lea.vmem %s2, %s416
      // Predicated region
      $region37: #{cnn_forward.4} parent=27 // pred_check
        %p418 = pneg %p92
      $region38: #{cnn_forward.4} parent=27 // pred_check_branch
        %420 = sbr.rel (%p418) target = $region40
      $region39: #{cnn_forward.4} parent=27 // pred_region
        _
      $region40: #{cnn_forward.4} parent=27 // pred_fallthru
        _
    $region28: #{cnn_forward.4} parent=5 // pred_fallthru
      _
    %p421 = scmp.le.s32.totalorder 2, %s8
    // Predicated region
    $region41: #{cnn_forward.4} parent=5 // pred_check
      %p422 = pneg %p421
    $region42: #{cnn_forward.4} parent=5 // pred_check_branch
      %424 = sbr.rel (%p422) target = $region44
    $region43: #{cnn_forward.4} parent=5 // pred_region
      %s425 = ssub.s32 %s8, 2
      // Predicated region
      $region45: #{cnn_forward.4} parent=43 // pred_check
        %p426 = pneg %p98
      $region46: #{cnn_forward.4} parent=43 // pred_check_branch
        %428 = sbr.rel (%p426) target = $region48
      $region47: #{cnn_forward.4} parent=43 // pred_region
        %p429 = scmp.lt.s32.totalorder %s19, 1
        %s430 = scalar_select %p429, %s19, 1
        %s431 = scalar_lea.vmem %s2, %s430
      $region48: #{cnn_forward.4} parent=43 // pred_fallthru
        _
    $region44: #{cnn_forward.4} parent=5 // pred_fallthru
      _
  $region6: #{cnn_forward.4} parent=0 // loop_footer
    %s12 = sadd.s32 1, %s8
  $region7: #{cnn_forward.4} parent=0 // loop_footer_branch
    %7 = sbr.rel target = $region3
  $region8: #{cnn_forward.4} parent=0 // loop_exit
    _

// kernel: cnn_forward.3
$region0: #{cnn_forward.3}
  #allocation0 [shape = 'u32[]', space=smem, size = 0x4, offset = 0x4, fixed_abs, tag = 'smem constant byte address 0x4 - core index']
  #allocation1 [shape = 'u32[144,128]{1,0:T(1,128)}', space=vmem, size = 0x12000, scoped, tag = 'internal scratch']
  #allocation2 [shape = 'f32[8,128]{1,0:T(8,128)}', space=vmem, size = 0x1000, scoped, tag = 'scratch operand']
  %s0 = inlined_call_operand.vmem [shape: bf16[2,64,64], index: 0, kind: input, shape index: {}]
  %s1 = inlined_call_operand.vmem [shape: bf16[64,128], index: 1, kind: input, shape index: {}]
  %s2 = inlined_call_operand.vmem [shape: bf16[2,1,128], index: 2, kind: output, shape index: {}]
  %s3 = sld [smem:[#allocation0]]
  $region49: #{cnn_forward.3} parent=0
    _
  %s5 = ssub.s32 1, %s3
  %s6 = scalar_select 0, %s5, %s3
  loop: start=0, step=1, limit=4
  $region2: #{cnn_forward.3} parent=0 // loop_pre_header
    _
  $region3: #{cnn_forward.3} parent=0 // loop_header
    %s8 = sphi 0, %s12
    %p9 = scmp.ge.s32.totalorder %s8, 4
    %s15 = sphi 0, %s27
    %s16 = sphi 0, %s23
    %s17 = sphi 0, %s15
    %s18 = sphi 0, %s16
    %s19 = sphi 0, %s17
    %s20 = sphi 0, %s18
    %s32 = sphi 0, %s34
    %s35 = sphi 0, %s32
    %s36 = sphi 0, %s35
    %s52 = sphi 0, %s36
    %s56 = sphi 0, %s56
    %s58 = sphi 0, %s56
    %s59 = sphi 0, %s58
    %s73 = sphi 0, %s59
    %s79 = sphi 0, %s81
    %s82 = sphi 0, %s79
    %s83 = sphi 0, %s82
    %s99 = sphi 0, %s83
  $region4: #{cnn_forward.3} parent=0 // loop_header_branch
    %11 = sbr.rel (%p9) target = $region8
  $region5: #{cnn_forward.3} parent=0 // loop_body
    %s13 = ssub.s32 %s8, 1
    %s14 = ssub.s32 %s8, 2
    %s21 = sadd.s32 1, %s16
    %p22 = scmp.ge.s32.totalorder %s21, 1
    %s23 = scalar_select %p22, 0, %s21
    %s24 = sadd.s32 1, %s15
    %s25 = scalar_select %p22, %s24, %s15
    %p26 = scmp.ge.s32.totalorder %s25, 2
    %s27 = scalar_select %p26, 0, %s25
    %s28 = ssub.s32 %s15, %s27
    %s29 = ssub.s32 %s16, %s23
    %s30 = sor.u32 %s28, %s29
    %p31 = scmp.eq.s32.totalorder %s30, 0
    %s33 = sadd.s32 %s32, 1
    %s34 = scalar_select %p31, %s32, %s33
    %p37 = pneg %p31
    %p38 = scmp.eq.s32.totalorder %s8, 1
    %p39 = por %p37, %p38
    %p40 = scmp.ne.s32.totalorder %s32, %s35
    %p41 = scmp.eq.s32.totalorder %s8, 0
    %p42 = por %p40, %p41
    %p43 = scmp.ne.s32.totalorder %s32, %s35
    %p44 = scmp.eq.s32.totalorder %s13, 1
    %p45 = por %p43, %p44
    %p46 = scmp.ne.s32.totalorder %s35, %s36
    %p47 = scmp.eq.s32.totalorder %s13, 0
    %p48 = por %p46, %p47
    %p49 = scmp.ne.s32.totalorder %s35, %s36
    %p50 = scmp.eq.s32.totalorder %s14, 1
    %p51 = por %p49, %p50
    %p53 = scmp.ne.s32.totalorder %s36, %s52
    %p54 = scmp.eq.s32.totalorder %s14, 0
    %p55 = por %p53, %p54
    %s57 = sadd.s32 %s56, 1
    %p60 = scmp.eq.s32.totalorder %s8, 1
    %p61 = scmp.ne.s32.totalorder %s56, %s58
    %p62 = scmp.eq.s32.totalorder %s8, 0
    %p63 = por %p61, %p62
    %p64 = scmp.ne.s32.totalorder %s56, %s58
    %p65 = scmp.eq.s32.totalorder %s13, 1
    %p66 = por %p64, %p65
    %p67 = scmp.ne.s32.totalorder %s58, %s59
    %p68 = scmp.eq.s32.totalorder %s13, 0
    %p69 = por %p67, %p68
    %p70 = scmp.ne.s32.totalorder %s58, %s59
    %p71 = scmp.eq.s32.totalorder %s14, 1
    %p72 = por %p70, %p71
    %p74 = scmp.ne.s32.totalorder %s59, %s73
    %p75 = scmp.eq.s32.totalorder %s14, 0
    %p76 = por %p74, %p75
    %s77 = ssub.s32 %s15, %s27
    %p78 = scmp.eq.s32.totalorder %s77, 0
    %s80 = sadd.s32 %s79, 1
    %s81 = scalar_select %p78, %s79, %s80
    %p84 = pneg %p78
    %p85 = scmp.eq.s32.totalorder %s8, 1
    %p86 = por %p84, %p85
    %p87 = scmp.ne.s32.totalorder %s79, %s82
    %p88 = scmp.eq.s32.totalorder %s8, 0
    %p89 = por %p87, %p88
    %p90 = scmp.ne.s32.totalorder %s79, %s82
    %p91 = scmp.eq.s32.totalorder %s13, 1
    %p92 = por %p90, %p91
    %p93 = scmp.ne.s32.totalorder %s82, %s83
    %p94 = scmp.eq.s32.totalorder %s13, 0
    %p95 = por %p93, %p94
    %p96 = scmp.ne.s32.totalorder %s82, %s83
    %p97 = scmp.eq.s32.totalorder %s14, 1
    %p98 = por %p96, %p97
    %p100 = scmp.ne.s32.totalorder %s83, %s99
    %p101 = scmp.eq.s32.totalorder %s14, 0
    %p102 = por %p100, %p101
    %p103 = scmp.le.s32.totalorder 1, %s8
    %p104 = scmp.lt.s32.totalorder %s8, 3
    %p105 = pnand %p103, %p104
    %p106 = pneg %p105
    // Predicated region
    $region9: #{cnn_forward.3} parent=5 // pred_check
      _
    $region10: #{cnn_forward.3} parent=5 // pred_check_branch
      %108 = sbr.rel (%p105) target = $region12
    $region11: #{cnn_forward.3} parent=5 // pred_region
      %s109 = ssub.s32 %s8, 1
      // Predicated region
      $region13: #{cnn_forward.3} parent=11 // pred_check
        %p110 = pneg %p69
      $region14: #{cnn_forward.3} parent=11 // pred_check_branch
        %112 = sbr.rel (%p110) target = $region16
      $region15: #{cnn_forward.3} parent=11 // pred_region
        _
      $region16: #{cnn_forward.3} parent=11 // pred_fallthru
        _
    $region12: #{cnn_forward.3} parent=5 // pred_fallthru
      _
    %p113 = scmp.lt.s32.totalorder %s8, 2
    // Predicated region
    $region17: #{cnn_forward.3} parent=5 // pred_check
      %p114 = pneg %p113
    $region18: #{cnn_forward.3} parent=5 // pred_check_branch
      %116 = sbr.rel (%p114) target = $region20
    $region19: #{cnn_forward.3} parent=5 // pred_region
      // Predicated region
      $region21: #{cnn_forward.3} parent=19 // pred_check
        %p117 = pneg %p42
      $region22: #{cnn_forward.3} parent=19 // pred_check_branch
        %119 = sbr.rel (%p117) target = $region24
      $region23: #{cnn_forward.3} parent=19 // pred_region
        %s120 = smul.u32 8, %s16
        %p121 = scmp.lt.s32.totalorder %s15, 1
        %s122 = scalar_select %p121, %s15, 1
        %p123 = scmp.lt.s32.totalorder %s120, 7
        %s124 = scalar_select %p123, %s120, 7
        %s125 = smul.addr %s122, 8
        %s126 = sadd.s32 %s124, %s125
        %s127 = smul.addr %s126, 4
        %s128 = scalar_lea.vmem %s0, %s127
        %s129 = smul.u32 8, %s16
      $region24: #{cnn_forward.3} parent=19 // pred_fallthru
        _
    $region20: #{cnn_forward.3} parent=5 // pred_fallthru
      _
    %p130 = scmp.le.s32.totalorder 1, %s8
    %p131 = scmp.lt.s32.totalorder %s8, 3
    %p132 = pnand %p130, %p131
    %p133 = pneg %p132
    // Predicated region
    $region25: #{cnn_forward.3} parent=5 // pred_check
      _
    $region26: #{cnn_forward.3} parent=5 // pred_check_branch
      %135 = sbr.rel (%p132) target = $region28
    $region27: #{cnn_forward.3} parent=5 // pred_region
      %s136 = ssub.s32 %s8, 1
      %s137 = smul.u32 8, %s18
      %p138 = scmp.lt.s32.totalorder %s17, 1
      %s139 = scalar_select %p138, %s17, 1
      %p140 = scmp.lt.s32.totalorder %s137, 7
      %s141 = scalar_select %p140, %s137, 7
      %s142 = smul.addr %s139, 8
      %s143 = sadd.s32 %s141, %s142
      %s144 = smul.addr %s143, 4
      %s145 = scalar_lea.vmem %s0, %s144
      %p146 = pneg %p48
      %p147 = pneg %p45
      %p148 = pneg %p69
      %p149 = pneg %p66
      %p150 = pneg %p95
      %p151 = pneg %p92
      %p152 = scmp.lt.s32.totalorder %s17, 1
      %s153 = scalar_select %p152, %s17, 1
      %s154 = scalar_lea.vmem %s2, %s153
      %s155 = smul.u32 8, %s18
      %p156 = scmp.lt.s32.totalorder %s17, 1
      %s157 = scalar_select %p156, %s17, 1
      %p158 = scmp.lt.s32.totalorder %s155, 7
      %s159 = scalar_select %p158, %s155, 7
      %s160 = smul.addr %s157, 8
      %s161 = sadd.s32 %s159, %s160
      %s162 = smul.addr %s161, 4
      %s163 = scalar_lea.vmem %s0, %s162
      %s164 = smul.u32 8, %s18
      %p165 = scmp.lt.s32.totalorder %s17, 1
      %s166 = scalar_select %p165, %s17, 1
      %s167 = scalar_lea.vmem %s2, %s166
      %p169 = scmp.eq.s32.totalorder %s18, 0
      // Predicated region
      $region29: #{cnn_forward.3} parent=27 // pred_check
        %p170 = pneg %p169
      $region30: #{cnn_forward.3} parent=27 // pred_check_branch
        %172 = sbr.rel (%p170) target = $region32
      $region31: #{cnn_forward.3} parent=27 // pred_region
        %173 = vst [vmem:[#allocation2] sm:$0xff] 0.0
      $region32: #{cnn_forward.3} parent=27 // pred_fallthru
        _
      %v174 = vld [vmem:[%s163] sm:$0xf]
      %v175 = vld [vmem:[%s163 + $0x4] sm:$0xf]
      %v176 = vld [vmem:[%s163 + $0x8] sm:$0xf]
      %v177 = vld [vmem:[%s163 + $0xc] sm:$0xf]
      %v178 = vld [vmem:[%s163 + $0x10] sm:$0xf]
      %v179 = vld [vmem:[%s163 + $0x14] sm:$0xf]
      %v180 = vld [vmem:[%s163 + $0x18] sm:$0xf]
      %v181 = vld [vmem:[%s163 + $0x1c] sm:$0xf]
      %v182 = vld [vmem:[%s1] sm:$0xf]
      %v183 = vld [vmem:[%s1 + $0x4] sm:$0xf]
      %v184 = vld [vmem:[%s1 + $0x8] sm:$0xf]
      %v185 = vld [vmem:[%s1 + $0xc] sm:$0xf]
      %v186 = vld [vmem:[%s1 + $0x10] sm:$0xf]
      %v187 = vld [vmem:[%s1 + $0x14] sm:$0xf]
      %v188 = vld [vmem:[%s1 + $0x18] sm:$0xf]
      %v189 = vld [vmem:[%s1 + $0x1c] sm:$0xf]
      %v198 = vunpack.c.l.b16 %v174
      %v199 = vunpack.c.l.b16 %v175
      %v200 = vunpack.c.l.b16 %v176
      %v201 = vunpack.c.l.b16 %v177
      %v202 = vunpack.c.l.b16 %v178
      %v203 = vunpack.c.l.b16 %v179
      %v204 = vunpack.c.l.b16 %v180
      %v205 = vunpack.c.l.b16 %v181
      %v206 = vpack.c.b16 %v199, %v198
      %v207 = vpack.c.b16 %v201, %v200
      %v208 = vpack.c.b16 %v203, %v202
      %v209 = vpack.c.b16 %v205, %v204
      %v218 = vunpack.c.l.b16 %v182
      %v219 = vunpack.c.l.b16 %v183
      %v220 = vunpack.c.l.b16 %v184
      %v221 = vunpack.c.l.b16 %v185
      %v222 = vunpack.c.l.b16 %v186
      %v223 = vunpack.c.l.b16 %v187
      %v224 = vunpack.c.l.b16 %v188
      %v225 = vunpack.c.l.b16 %v189
      %v226 = vpack.c.b16 %v219, %v218
      %v227 = vpack.c.b16 %v221, %v220
      %v228 = vpack.c.b16 %v223, %v222
      %v229 = vpack.c.b16 %v225, %v224
      %vm234 = vcmask 523264
      %v236 = vsel %vm234, %v206, 0
      %v239 = vsel %vm234, %v207, 0
      %v242 = vsel %vm234, %v208, 0
      %v245 = vsel %vm234, %v209, 0
      %247 = vmatprep.subr.bf16.mxu0 0
      %248 = vmatpush1.bf16.msra.mxu0 0
      %249 = vmatprep.subr.bf16.mxu0 0
      %250 = vmatpush1.bf16.msra.mxu0 0
      %251 = vmatprep.subr.bf16.mxu0 0
      %252 = vmatpush1.bf16.msra.mxu0 0
      %253 = vmatprep.subr.bf16.mxu0 0
      %254 = vmatpush1.bf16.msra.mxu0 0
      %255 = vmatprep.subr.bf16.mxu0 0
      %256 = vmatpush1.bf16.msra.mxu0 %v229
      %257 = vmatprep.subr.bf16.mxu0 0
      %258 = vmatpush1.bf16.msra.mxu0 %v228
      %259 = vmatprep.subr.bf16.mxu0 0
      %260 = vmatpush1.bf16.msra.mxu0 %v227
      %261 = vmatprep.subr.bf16.mxu0 0
      %262 = vmatpush1.bf16.msra.mxu0 %v226
      %263 = vmatprep.subr.bf16.mxu0 0
      %264 = vmatpush2.bf16.msra.mxu0 0
      %265 = vmatprep.subr.bf16.mxu0 0
      %266 = vmatpush2.bf16.msra.mxu0 0
      %267 = vmatprep.subr.bf16.mxu0 0
      %268 = vmatpush2.bf16.msra.mxu0 0
      %269 = vmatprep.subr.bf16.mxu0 0
      %270 = vmatpush2.bf16.msra.mxu0 0
      %271 = vmatprep.subr.bf16.mxu0 0
      %272 = vmatpush2.bf16.msra.mxu0 0
      %273 = vmatprep.subr.bf16.mxu0 0
      %274 = vmatpush2.bf16.msra.mxu0 0
      %275 = vmatprep.subr.bf16.mxu0 0
      %276 = vmatpush2.bf16.msra.mxu0 0
      %277 = vmatprep.subr.bf16.mxu0 0
      %278 = vmatpush2.bf16.msra.mxu0 0
      %279 = vmatprep.mubr.bf16.mxu0 0
      %280 = vmatmul.mubr.bf16.gmra.mxu0 %v236
      %v281 = vpop.f32.mrf.mxu0
      %v282 = vadd.f32 0.0, %v281
      %v283 = vpop.f32.mrf.mxu0
      %v284 = vpop.f32.mrf.mxu0
      %v285 = vadd.f32 0.0, %v284
      %v286 = vpop.f32.mrf.mxu0
      %287 = vmatprep.mubr.bf16.mxu0 0
      %288 = vmatmul.mubr.bf16.gmra.mxu0 %v239
      %v289 = vpop.f32.mrf.mxu0
      %v290 = vadd.f32 0.0, %v289
      %v291 = vpop.f32.mrf.mxu0
      %v292 = vpop.f32.mrf.mxu0
      %v293 = vadd.f32 0.0, %v292
      %v294 = vpop.f32.mrf.mxu0
      %295 = vmatprep.mubr.bf16.mxu0 0
      %296 = vmatmul.mubr.bf16.gmra.mxu0 %v242
      %v297 = vpop.f32.mrf.mxu0
      %v298 = vadd.f32 0.0, %v297
      %v299 = vpop.f32.mrf.mxu0
      %v300 = vpop.f32.mrf.mxu0
      %v301 = vadd.f32 0.0, %v300
      %v302 = vpop.f32.mrf.mxu0
      %303 = vmatprep.mubr.bf16.mxu0 0
      %304 = vmatmul.mubr.bf16.gmra.mxu0 %v245
      %v305 = vpop.f32.mrf.mxu0
      %v306 = vadd.f32 0.0, %v305
      %v307 = vpop.f32.mrf.mxu0
      %v308 = vpop.f32.mrf.mxu0
      %v309 = vadd.f32 0.0, %v308
      %v310 = vpop.f32.mrf.mxu0
      %311 = vdwg.mxu0
      %v312 = vmax.f32 %v282, 0.0
      %v313 = vmax.f32 %v285, 0.0
      %v314 = vmax.f32 %v290, 0.0
      %v315 = vmax.f32 %v293, 0.0
      %v316 = vmax.f32 %v298, 0.0
      %v317 = vmax.f32 %v301, 0.0
      %v318 = vmax.f32 %v306, 0.0
      %v319 = vmax.f32 %v309, 0.0
      %v320 = vld [vmem:[#allocation2] sm:$0xff]
      %v321 = vadd.f32 %v312, %v313
      %v322 = vadd.f32 %v321, %v314
      %v323 = vadd.f32 %v322, %v315
      %v324 = vadd.f32 %v323, %v316
      %v325 = vadd.f32 %v324, %v317
      %v326 = vadd.f32 %v325, %v318
      %v327 = vadd.f32 %v326, %v319
      %v328 = vadd.f32 %v320, %v327
      %329 = vst [vmem:[#allocation2] sm:$0xff] %v328
      // Predicated region
      $region33: #{cnn_forward.3} parent=27 // pred_check
        %p330 = pneg %p169
      $region34: #{cnn_forward.3} parent=27 // pred_check_branch
        %332 = sbr.rel (%p330) target = $region36
      $region35: #{cnn_forward.3} parent=27 // pred_region
        %v333 = vld [vmem:[#allocation2] sm:$0xff]
        %v334 = vrot.slane %v333, 4
        %v335 = vadd.f32 %v333, %v334
        %v336 = vrot.slane %v335, 2
        %v337 = vadd.f32 %v335, %v336
        %v338 = vrot.slane %v337, 1
        %v339 = vadd.f32 %v337, %v338
        %v340 = vmul.f32 %v339, 0.015625
        %v341 = vpack.c.bf16 %v340, %v340
        %vm342 = vcmask 1040384
        %vm343 = vsmask.f32 256
        %vm344 = vmand %vm342, %vm343
        %v345 = vld [vmem:[%s167] sm:$0x1]
        %v346 = vsel %vm344, %v341, %v345
        %347 = vst [vmem:[%s167] sm:$0x1] %v346
      $region36: #{cnn_forward.3} parent=27 // pred_fallthru
        _
      %p348 = scmp.lt.s32.totalorder %s17, 1
      %s349 = scalar_select %p348, %s17, 1
      %s350 = scalar_lea.vmem %s2, %s349
      // Predicated region
      $region37: #{cnn_forward.3} parent=27 // pred_check
        %p351 = pneg %p92
      $region38: #{cnn_forward.3} parent=27 // pred_check_branch
        %353 = sbr.rel (%p351) target = $region40
      $region39: #{cnn_forward.3} parent=27 // pred_region
        _
      $region40: #{cnn_forward.3} parent=27 // pred_fallthru
        _
    $region28: #{cnn_forward.3} parent=5 // pred_fallthru
      _
    %p354 = scmp.le.s32.totalorder 2, %s8
    // Predicated region
    $region41: #{cnn_forward.3} parent=5 // pred_check
      %p355 = pneg %p354
    $region42: #{cnn_forward.3} parent=5 // pred_check_branch
      %357 = sbr.rel (%p355) target = $region44
    $region43: #{cnn_forward.3} parent=5 // pred_region
      %s358 = ssub.s32 %s8, 2
      // Predicated region
      $region45: #{cnn_forward.3} parent=43 // pred_check
        %p359 = pneg %p98
      $region46: #{cnn_forward.3} parent=43 // pred_check_branch
        %361 = sbr.rel (%p359) target = $region48
      $region47: #{cnn_forward.3} parent=43 // pred_region
        %p362 = scmp.lt.s32.totalorder %s19, 1
        %s363 = scalar_select %p362, %s19, 1
        %s364 = scalar_lea.vmem %s2, %s363
      $region48: #{cnn_forward.3} parent=43 // pred_fallthru
        _
    $region44: #{cnn_forward.3} parent=5 // pred_fallthru
      _
  $region6: #{cnn_forward.3} parent=0 // loop_footer
    %s12 = sadd.s32 1, %s8
  $region7: #{cnn_forward.3} parent=0 // loop_footer_branch
    %7 = sbr.rel target = $region3
  $region8: #{cnn_forward.3} parent=0 // loop_exit
    _

// kernel: cnn_forward.5
$region0: #{cnn_forward.5}
  #allocation0 [shape = 'u32[]', space=smem, size = 0x4, offset = 0x4, fixed_abs, tag = 'smem constant byte address 0x4 - core index']
  #allocation1 [shape = 'u32[144,128]{1,0:T(1,128)}', space=vmem, size = 0x12000, scoped, tag = 'internal scratch']
  %s0 = inlined_call_operand.vmem [shape: bf16[2,128], index: 0, kind: input, shape index: {}]
  %s1 = inlined_call_operand.vmem [shape: bf16[2,128], index: 1, kind: input, shape index: {}]
  %s2 = inlined_call_operand.vmem [shape: bf16[128,384], index: 2, kind: input, shape index: {}]
  %s3 = inlined_call_operand.vmem [shape: bf16[128,384], index: 3, kind: input, shape index: {}]
  %s4 = inlined_call_operand.vmem [shape: f32[1,384], index: 4, kind: input, shape index: {}]
  %s5 = inlined_call_operand.vmem [shape: f32[1,384], index: 5, kind: input, shape index: {}]
  %s6 = inlined_call_operand.vmem [shape: f32[1,384], index: 6, kind: input, shape index: {}]
  %s7 = inlined_call_operand.hbm [shape: f32[2,384], index: 7, kind: output, shape index: {0}]
  %s8 = inlined_call_operand.hbm [shape: f32[2,384], index: 8, kind: output, shape index: {1}]
  %s9 = inlined_call_operand.hbm [shape: f32[2,384], index: 9, kind: output, shape index: {2}]
  %10 = xla_tuple %s7, %s8, %s9
  %s11 = sld [smem:[#allocation0]]
  $region54: #{cnn_forward.5} parent=0
    _
  %s13 = ssub.s32 1, %s11
  %s14 = scalar_select 0, %s13, %s11
  $region1: #{cnn_forward.5} parent=0
    #allocation2 [shape = 'u8[3072]{0}', space=vmem, size = 0xc00, scoped, tag = 'output window, operand 0, single buffered']
    #allocation3 [shape = 's32[1]{0}', space=sflag, size = 0x4, scoped, tag = 'scoped memory for cnn_forward.5']
    #allocation4 [shape = 'u8[3072]{0}', space=vmem, size = 0xc00, scoped, tag = 'output window, operand 1, single buffered']
    #allocation5 [shape = 's32[1]{0}', space=sflag, size = 0x4, scoped, tag = 'scoped memory for cnn_forward.5']
    #allocation6 [shape = 'u8[3072]{0}', space=vmem, size = 0xc00, scoped, tag = 'output window, operand 2, single buffered']
    %15 = vsyncpa [#allocation3], 0
    %16 = vsyncpa [#allocation5], 0
    // Predicated region
    $region2: #{cnn_forward.5} parent=1 // pred_check
      _
    $region3: #{cnn_forward.5} parent=1 // pred_check_branch
      %18 = sbr.rel (0) target = $region5
    $region4: #{cnn_forward.5} parent=1 // pred_region
      _
    $region5: #{cnn_forward.5} parent=1 // pred_fallthru
      _
    // Predicated region
    $region6: #{cnn_forward.5} parent=1 // pred_check
      _
    $region7: #{cnn_forward.5} parent=1 // pred_check_branch
      %20 = sbr.rel (0) target = $region9
    $region8: #{cnn_forward.5} parent=1 // pred_region
      _
    $region9: #{cnn_forward.5} parent=1 // pred_fallthru
      _
    // Predicated region
    $region10: #{cnn_forward.5} parent=1 // pred_check
      _
    $region11: #{cnn_forward.5} parent=1 // pred_check_branch
      %22 = sbr.rel (0) target = $region13
    $region12: #{cnn_forward.5} parent=1 // pred_region
      _
    $region13: #{cnn_forward.5} parent=1 // pred_fallthru
      _
    // Predicated region
    $region14: #{cnn_forward.5} parent=1 // pred_check
      _
    $region15: #{cnn_forward.5} parent=1 // pred_check_branch
      %24 = sbr.rel (0) target = $region17
    $region16: #{cnn_forward.5} parent=1 // pred_region
      _
    $region17: #{cnn_forward.5} parent=1 // pred_fallthru
      _
    // Predicated region
    $region18: #{cnn_forward.5} parent=1 // pred_check
      _
    $region19: #{cnn_forward.5} parent=1 // pred_check_branch
      %26 = sbr.rel (0) target = $region21
    $region20: #{cnn_forward.5} parent=1 // pred_region
      _
    $region21: #{cnn_forward.5} parent=1 // pred_fallthru
      _
    // Predicated region
    $region22: #{cnn_forward.5} parent=1 // pred_check
      _
    $region23: #{cnn_forward.5} parent=1 // pred_check_branch
      %28 = sbr.rel (0) target = $region25
    $region24: #{cnn_forward.5} parent=1 // pred_region
      _
    $region25: #{cnn_forward.5} parent=1 // pred_fallthru
      _
    // Predicated region
    $region26: #{cnn_forward.5} parent=1 // pred_check
      _
    $region27: #{cnn_forward.5} parent=1 // pred_check_branch
      %30 = sbr.rel (0) target = $region29
    $region28: #{cnn_forward.5} parent=1 // pred_region
      _
    $region29: #{cnn_forward.5} parent=1 // pred_fallthru
      _
    %v32 = vld [vmem:[%s0] sm:$0x1]
    %v33 = vld [vmem:[%s2] sm:$0xff]
    %v34 = vld [vmem:[%s2 + $0x8] sm:$0xf]
    %v35 = vld [vmem:[%s2 + $0xc] sm:$0xff]
    %v36 = vld [vmem:[%s2 + $0x14] sm:$0xf]
    %v37 = vld [vmem:[%s2 + $0x18] sm:$0xff]
    %v38 = vld [vmem:[%s2 + $0x20] sm:$0xf]
    %v39 = vld [vmem:[%s2 + $0x24] sm:$0xff]
    %v40 = vld [vmem:[%s2 + $0x2c] sm:$0xf]
    %v41 = vld [vmem:[%s2 + $0x30] sm:$0xff]
    %v42 = vld [vmem:[%s2 + $0x38] sm:$0xf]
    %v43 = vld [vmem:[%s2 + $0x3c] sm:$0xff]
    %v44 = vld [vmem:[%s2 + $0x44] sm:$0xf]
    %v45 = vld [vmem:[%s2 + $0x48] sm:$0xff]
    %v46 = vld [vmem:[%s2 + $0x50] sm:$0xf]
    %v47 = vld [vmem:[%s2 + $0x54] sm:$0xff]
    %v48 = vld [vmem:[%s2 + $0x5c] sm:$0xf]
    %v49 = vld [vmem:[%s2 + $0x60] sm:$0xff]
    %v50 = vld [vmem:[%s2 + $0x68] sm:$0xf]
    %v51 = vld [vmem:[%s2 + $0x6c] sm:$0xff]
    %v52 = vld [vmem:[%s2 + $0x74] sm:$0xf]
    %v53 = vld [vmem:[%s2 + $0x78] sm:$0xff]
    %v54 = vld [vmem:[%s2 + $0x80] sm:$0xf]
    %v55 = vld [vmem:[%s2 + $0x84] sm:$0xff]
    %v56 = vld [vmem:[%s2 + $0x8c] sm:$0xf]
    %v57 = vld [vmem:[%s2 + $0x90] sm:$0xff]
    %v58 = vld [vmem:[%s2 + $0x98] sm:$0xf]
    %v59 = vld [vmem:[%s2 + $0x9c] sm:$0xff]
    %v60 = vld [vmem:[%s2 + $0xa4] sm:$0xf]
    %v61 = vld [vmem:[%s2 + $0xa8] sm:$0xff]
    %v62 = vld [vmem:[%s2 + $0xb0] sm:$0xf]
    %v63 = vld [vmem:[%s2 + $0xb4] sm:$0xff]
    %v64 = vld [vmem:[%s2 + $0xbc] sm:$0xf]
    %v97 = vunpack.c.l.b16 %v33
    %v98 = vunpack.c.h.b16 %v33
    %v99 = vunpack.c.l.b16 %v34
    %v100 = vunpack.c.l.b16 %v35
    %v101 = vunpack.c.h.b16 %v35
    %v102 = vunpack.c.l.b16 %v36
    %v103 = vunpack.c.l.b16 %v37
    %v104 = vunpack.c.h.b16 %v37
    %v105 = vunpack.c.l.b16 %v38
    %v106 = vunpack.c.l.b16 %v39
    %v107 = vunpack.c.h.b16 %v39
    %v108 = vunpack.c.l.b16 %v40
    %v109 = vunpack.c.l.b16 %v41
    %v110 = vunpack.c.h.b16 %v41
    %v111 = vunpack.c.l.b16 %v42
    %v112 = vunpack.c.l.b16 %v43
    %v113 = vunpack.c.h.b16 %v43
    %v114 = vunpack.c.l.b16 %v44
    %v115 = vunpack.c.l.b16 %v45
    %v116 = vunpack.c.h.b16 %v45
    %v117 = vunpack.c.l.b16 %v46
    %v118 = vunpack.c.l.b16 %v47
    %v119 = vunpack.c.h.b16 %v47
    %v120 = vunpack.c.l.b16 %v48
    %v121 = vunpack.c.l.b16 %v49
    %v122 = vunpack.c.h.b16 %v49
    %v123 = vunpack.c.l.b16 %v50
    %v124 = vunpack.c.l.b16 %v51
    %v125 = vunpack.c.h.b16 %v51
    %v126 = vunpack.c.l.b16 %v52
    %v127 = vunpack.c.l.b16 %v53
    %v128 = vunpack.c.h.b16 %v53
    %v129 = vunpack.c.l.b16 %v54
    %v130 = vunpack.c.l.b16 %v55
    %v131 = vunpack.c.h.b16 %v55
    %v132 = vunpack.c.l.b16 %v56
    %v133 = vunpack.c.l.b16 %v57
    %v134 = vunpack.c.h.b16 %v57
    %v135 = vunpack.c.l.b16 %v58
    %v136 = vunpack.c.l.b16 %v59
    %v137 = vunpack.c.h.b16 %v59
    %v138 = vunpack.c.l.b16 %v60
    %v139 = vunpack.c.l.b16 %v61
    %v140 = vunpack.c.h.b16 %v61
    %v141 = vunpack.c.l.b16 %v62
    %v142 = vunpack.c.l.b16 %v63
    %v143 = vunpack.c.h.b16 %v63
    %v144 = vunpack.c.l.b16 %v64
    %v145 = vpack.c.b16 %v100, %v97
    %v146 = vpack.c.b16 %v101, %v98
    %v147 = vpack.c.b16 %v102, %v99
    %v148 = vpack.c.b16 %v106, %v103
    %v149 = vpack.c.b16 %v107, %v104
    %v150 = vpack.c.b16 %v108, %v105
    %v151 = vpack.c.b16 %v112, %v109
    %v152 = vpack.c.b16 %v113, %v110
    %v153 = vpack.c.b16 %v114, %v111
    %v154 = vpack.c.b16 %v118, %v115
    %v155 = vpack.c.b16 %v119, %v116
    %v156 = vpack.c.b16 %v120, %v117
    %v157 = vpack.c.b16 %v124, %v121
    %v158 = vpack.c.b16 %v125, %v122
    %v159 = vpack.c.b16 %v126, %v123
    %v160 = vpack.c.b16 %v130, %v127
    %v161 = vpack.c.b16 %v131, %v128
    %v162 = vpack.c.b16 %v132, %v129
    %v163 = vpack.c.b16 %v136, %v133
    %v164 = vpack.c.b16 %v137, %v134
    %v165 = vpack.c.b16 %v138, %v135
    %v166 = vpack.c.b16 %v142, %v139
    %v167 = vpack.c.b16 %v143, %v140
    %v168 = vpack.c.b16 %v144, %v141
    %193 = vmatprep.subr.bf16.mxu0 %v167
    %194 = vmatpush1.bf16.msra.mxu0 %v166
    %195 = vmatprep.subr.bf16.mxu0 %v164
    %196 = vmatpush1.bf16.msra.mxu0 %v163
    %197 = vmatprep.subr.bf16.mxu0 %v161
    %198 = vmatpush1.bf16.msra.mxu0 %v160
    %199 = vmatprep.subr.bf16.mxu0 %v158
    %200 = vmatpush1.bf16.msra.mxu0 %v157
    %201 = vmatprep.subr.bf16.mxu0 %v155
    %202 = vmatpush1.bf16.msra.mxu0 %v154
    %203 = vmatprep.subr.bf16.mxu0 %v152
    %204 = vmatpush1.bf16.msra.mxu0 %v151
    %205 = vmatprep.subr.bf16.mxu0 %v149
    %206 = vmatpush1.bf16.msra.mxu0 %v148
    %207 = vmatprep.subr.bf16.mxu0 %v146
    %208 = vmatpush1.bf16.msra.mxu0 %v145
    %209 = vmatprep.subr.bf16.mxu0 0
    %210 = vmatpush2.bf16.msra.mxu0 0
    %211 = vmatprep.subr.bf16.mxu0 0
    %212 = vmatpush2.bf16.msra.mxu0 0
    %213 = vmatprep.subr.bf16.mxu0 0
    %214 = vmatpush2.bf16.msra.mxu0 0
    %215 = vmatprep.subr.bf16.mxu0 0
    %216 = vmatpush2.bf16.msra.mxu0 0
    %217 = vmatprep.subr.bf16.mxu0 0
    %218 = vmatpush2.bf16.msra.mxu0 0
    %219 = vmatprep.subr.bf16.mxu0 0
    %220 = vmatpush2.bf16.msra.mxu0 0
    %221 = vmatprep.subr.bf16.mxu0 0
    %222 = vmatpush2.bf16.msra.mxu0 0
    %223 = vmatprep.subr.bf16.mxu0 0
    %224 = vmatpush2.bf16.msra.mxu0 0
    %225 = vmatprep.mubr.bf16.mxu0 0
    %226 = vmatmul.mubr.bf16.gmra.mxu0 %v32
    %v227 = vpop.f32.mrf.mxu0
    %v228 = vadd.f32 0.0, %v227
    %v229 = vpop.f32.mrf.mxu0
    %v230 = vadd.f32 0.0, %v229
    %v231 = vpop.f32.mrf.mxu0
    %v232 = vpop.f32.mrf.mxu0
    %233 = vdwg.mxu0
    %234 = vmatprep.subr.bf16.mxu0 0
    %235 = vmatpush1.bf16.msra.mxu0 %v168
    %236 = vmatprep.subr.bf16.mxu0 0
    %237 = vmatpush1.bf16.msra.mxu0 %v165
    %238 = vmatprep.subr.bf16.mxu0 0
    %239 = vmatpush1.bf16.msra.mxu0 %v162
    %240 = vmatprep.subr.bf16.mxu0 0
    %241 = vmatpush1.bf16.msra.mxu0 %v159
    %242 = vmatprep.subr.bf16.mxu0 0
    %243 = vmatpush1.bf16.msra.mxu0 %v156
    %244 = vmatprep.subr.bf16.mxu0 0
    %245 = vmatpush1.bf16.msra.mxu0 %v153
    %246 = vmatprep.subr.bf16.mxu0 0
    %247 = vmatpush1.bf16.msra.mxu0 %v150
    %248 = vmatprep.subr.bf16.mxu0 0
    %249 = vmatpush1.bf16.msra.mxu0 %v147
    %250 = vmatprep.subr.bf16.mxu0 0
    %251 = vmatpush2.bf16.msra.mxu0 0
    %252 = vmatprep.subr.bf16.mxu0 0
    %253 = vmatpush2.bf16.msra.mxu0 0
    %254 = vmatprep.subr.bf16.mxu0 0
    %255 = vmatpush2.bf16.msra.mxu0 0
    %256 = vmatprep.subr.bf16.mxu0 0
    %257 = vmatpush2.bf16.msra.mxu0 0
    %258 = vmatprep.subr.bf16.mxu0 0
    %259 = vmatpush2.bf16.msra.mxu0 0
    %260 = vmatprep.subr.bf16.mxu0 0
    %261 = vmatpush2.bf16.msra.mxu0 0
    %262 = vmatprep.subr.bf16.mxu0 0
    %263 = vmatpush2.bf16.msra.mxu0 0
    %264 = vmatprep.subr.bf16.mxu0 0
    %265 = vmatpush2.bf16.msra.mxu0 0
    %266 = vmatprep.mubr.bf16.mxu0 0
    %267 = vmatmul.mubr.bf16.gmra.mxu0 %v32
    %v268 = vpop.f32.mrf.mxu0
    %v269 = vadd.f32 0.0, %v268
    %v270 = vpop.f32.mrf.mxu0
    %v271 = vpop.f32.mrf.mxu0
    %v272 = vpop.f32.mrf.mxu0
    %273 = vdwg.mxu0
    %v274 = vld [vmem:[%s1] sm:$0x1]
    %v275 = vld [vmem:[%s3] sm:$0xff]
    %v276 = vld [vmem:[%s3 + $0x8] sm:$0xf]
    %v277 = vld [vmem:[%s3 + $0xc] sm:$0xff]
    %v278 = vld [vmem:[%s3 + $0x14] sm:$0xf]
    %v279 = vld [vmem:[%s3 + $0x18] sm:$0xff]
    %v280 = vld [vmem:[%s3 + $0x20] sm:$0xf]
    %v281 = vld [vmem:[%s3 + $0x24] sm:$0xff]
    %v282 = vld [vmem:[%s3 + $0x2c] sm:$0xf]
    %v283 = vld [vmem:[%s3 + $0x30] sm:$0xff]
    %v284 = vld [vmem:[%s3 + $0x38] sm:$0xf]
    %v285 = vld [vmem:[%s3 + $0x3c] sm:$0xff]
    %v286 = vld [vmem:[%s3 + $0x44] sm:$0xf]
    %v287 = vld [vmem:[%s3 + $0x48] sm:$0xff]
    %v288 = vld [vmem:[%s3 + $0x50] sm:$0xf]
    %v289 = vld [vmem:[%s3 + $0x54] sm:$0xff]
    %v290 = vld [vmem:[%s3 + $0x5c] sm:$0xf]
    %v291 = vld [vmem:[%s3 + $0x60] sm:$0xff]
    %v292 = vld [vmem:[%s3 + $0x68] sm:$0xf]
    %v293 = vld [vmem:[%s3 + $0x6c] sm:$0xff]
    %v294 = vld [vmem:[%s3 + $0x74] sm:$0xf]
    %v295 = vld [vmem:[%s3 + $0x78] sm:$0xff]
    %v296 = vld [vmem:[%s3 + $0x80] sm:$0xf]
    %v297 = vld [vmem:[%s3 + $0x84] sm:$0xff]
    %v298 = vld [vmem:[%s3 + $0x8c] sm:$0xf]
    %v299 = vld [vmem:[%s3 + $0x90] sm:$0xff]
    %v300 = vld [vmem:[%s3 + $0x98] sm:$0xf]
    %v301 = vld [vmem:[%s3 + $0x9c] sm:$0xff]
    %v302 = vld [vmem:[%s3 + $0xa4] sm:$0xf]
    %v303 = vld [vmem:[%s3 + $0xa8] sm:$0xff]
    %v304 = vld [vmem:[%s3 + $0xb0] sm:$0xf]
    %v305 = vld [vmem:[%s3 + $0xb4] sm:$0xff]
    %v306 = vld [vmem:[%s3 + $0xbc] sm:$0xf]
    %v339 = vunpack.c.l.b16 %v275
    %v340 = vunpack.c.h.b16 %v275
    %v341 = vunpack.c.l.b16 %v276
    %v342 = vunpack.c.l.b16 %v277
    %v343 = vunpack.c.h.b16 %v277
    %v344 = vunpack.c.l.b16 %v278
    %v345 = vunpack.c.l.b16 %v279
    %v346 = vunpack.c.h.b16 %v279
    %v347 = vunpack.c.l.b16 %v280
    %v348 = vunpack.c.l.b16 %v281
    %v349 = vunpack.c.h.b16 %v281
    %v350 = vunpack.c.l.b16 %v282
    %v351 = vunpack.c.l.b16 %v283
    %v352 = vunpack.c.h.b16 %v283
    %v353 = vunpack.c.l.b16 %v284
    %v354 = vunpack.c.l.b16 %v285
    %v355 = vunpack.c.h.b16 %v285
    %v356 = vunpack.c.l.b16 %v286
    %v357 = vunpack.c.l.b16 %v287
    %v358 = vunpack.c.h.b16 %v287
    %v359 = vunpack.c.l.b16 %v288
    %v360 = vunpack.c.l.b16 %v289
    %v361 = vunpack.c.h.b16 %v289
    %v362 = vunpack.c.l.b16 %v290
    %v363 = vunpack.c.l.b16 %v291
    %v364 = vunpack.c.h.b16 %v291
    %v365 = vunpack.c.l.b16 %v292
    %v366 = vunpack.c.l.b16 %v293
    %v367 = vunpack.c.h.b16 %v293
    %v368 = vunpack.c.l.b16 %v294
    %v369 = vunpack.c.l.b16 %v295
    %v370 = vunpack.c.h.b16 %v295
    %v371 = vunpack.c.l.b16 %v296
    %v372 = vunpack.c.l.b16 %v297
    %v373 = vunpack.c.h.b16 %v297
    %v374 = vunpack.c.l.b16 %v298
    %v375 = vunpack.c.l.b16 %v299
    %v376 = vunpack.c.h.b16 %v299
    %v377 = vunpack.c.l.b16 %v300
    %v378 = vunpack.c.l.b16 %v301
    %v379 = vunpack.c.h.b16 %v301
    %v380 = vunpack.c.l.b16 %v302
    %v381 = vunpack.c.l.b16 %v303
    %v382 = vunpack.c.h.b16 %v303
    %v383 = vunpack.c.l.b16 %v304
    %v384 = vunpack.c.l.b16 %v305
    %v385 = vunpack.c.h.b16 %v305
    %v386 = vunpack.c.l.b16 %v306
    %v387 = vpack.c.b16 %v342, %v339
    %v388 = vpack.c.b16 %v343, %v340
    %v389 = vpack.c.b16 %v344, %v341
    %v390 = vpack.c.b16 %v348, %v345
    %v391 = vpack.c.b16 %v349, %v346
    %v392 = vpack.c.b16 %v350, %v347
    %v393 = vpack.c.b16 %v354, %v351
    %v394 = vpack.c.b16 %v355, %v352
    %v395 = vpack.c.b16 %v356, %v353
    %v396 = vpack.c.b16 %v360, %v357
    %v397 = vpack.c.b16 %v361, %v358
    %v398 = vpack.c.b16 %v362, %v359
    %v399 = vpack.c.b16 %v366, %v363
    %v400 = vpack.c.b16 %v367, %v364
    %v401 = vpack.c.b16 %v368, %v365
    %v402 = vpack.c.b16 %v372, %v369
    %v403 = vpack.c.b16 %v373, %v370
    %v404 = vpack.c.b16 %v374, %v371
    %v405 = vpack.c.b16 %v378, %v375
    %v406 = vpack.c.b16 %v379, %v376
    %v407 = vpack.c.b16 %v380, %v377
    %v408 = vpack.c.b16 %v384, %v381
    %v409 = vpack.c.b16 %v385, %v382
    %v410 = vpack.c.b16 %v386, %v383
    %435 = vmatprep.subr.bf16.mxu0 %v409
    %436 = vmatpush1.bf16.msra.mxu0 %v408
    %437 = vmatprep.subr.bf16.mxu0 %v406
    %438 = vmatpush1.bf16.msra.mxu0 %v405
    %439 = vmatprep.subr.bf16.mxu0 %v403
    %440 = vmatpush1.bf16.msra.mxu0 %v402
    %441 = vmatprep.subr.bf16.mxu0 %v400
    %442 = vmatpush1.bf16.msra.mxu0 %v399
    %443 = vmatprep.subr.bf16.mxu0 %v397
    %444 = vmatpush1.bf16.msra.mxu0 %v396
    %445 = vmatprep.subr.bf16.mxu0 %v394
    %446 = vmatpush1.bf16.msra.mxu0 %v393
    %447 = vmatprep.subr.bf16.mxu0 %v391
    %448 = vmatpush1.bf16.msra.mxu0 %v390
    %449 = vmatprep.subr.bf16.mxu0 %v388
    %450 = vmatpush1.bf16.msra.mxu0 %v387
    %451 = vmatprep.subr.bf16.mxu0 0
    %452 = vmatpush2.bf16.msra.mxu0 0
    %453 = vmatprep.subr.bf16.mxu0 0
    %454 = vmatpush2.bf16.msra.mxu0 0
    %455 = vmatprep.subr.bf16.mxu0 0
    %456 = vmatpush2.bf16.msra.mxu0 0
    %457 = vmatprep.subr.bf16.mxu0 0
    %458 = vmatpush2.bf16.msra.mxu0 0
    %459 = vmatprep.subr.bf16.mxu0 0
    %460 = vmatpush2.bf16.msra.mxu0 0
    %461 = vmatprep.subr.bf16.mxu0 0
    %462 = vmatpush2.bf16.msra.mxu0 0
    %463 = vmatprep.subr.bf16.mxu0 0
    %464 = vmatpush2.bf16.msra.mxu0 0
    %465 = vmatprep.subr.bf16.mxu0 0
    %466 = vmatpush2.bf16.msra.mxu0 0
    %467 = vmatprep.mubr.bf16.mxu0 0
    %468 = vmatmul.mubr.bf16.gmra.mxu0 %v274
    %v469 = vpop.f32.mrf.mxu0
    %v470 = vadd.f32 0.0, %v469
    %v471 = vpop.f32.mrf.mxu0
    %v472 = vadd.f32 0.0, %v471
    %v473 = vpop.f32.mrf.mxu0
    %v474 = vpop.f32.mrf.mxu0
    %475 = vdwg.mxu0
    %476 = vmatprep.subr.bf16.mxu0 0
    %477 = vmatpush1.bf16.msra.mxu0 %v410
    %478 = vmatprep.subr.bf16.mxu0 0
    %479 = vmatpush1.bf16.msra.mxu0 %v407
    %480 = vmatprep.subr.bf16.mxu0 0
    %481 = vmatpush1.bf16.msra.mxu0 %v404
    %482 = vmatprep.subr.bf16.mxu0 0
    %483 = vmatpush1.bf16.msra.mxu0 %v401
    %484 = vmatprep.subr.bf16.mxu0 0
    %485 = vmatpush1.bf16.msra.mxu0 %v398
    %486 = vmatprep.subr.bf16.mxu0 0
    %487 = vmatpush1.bf16.msra.mxu0 %v395
    %488 = vmatprep.subr.bf16.mxu0 0
    %489 = vmatpush1.bf16.msra.mxu0 %v392
    %490 = vmatprep.subr.bf16.mxu0 0
    %491 = vmatpush1.bf16.msra.mxu0 %v389
    %492 = vmatprep.subr.bf16.mxu0 0
    %493 = vmatpush2.bf16.msra.mxu0 0
    %494 = vmatprep.subr.bf16.mxu0 0
    %495 = vmatpush2.bf16.msra.mxu0 0
    %496 = vmatprep.subr.bf16.mxu0 0
    %497 = vmatpush2.bf16.msra.mxu0 0
    %498 = vmatprep.subr.bf16.mxu0 0
    %499 = vmatpush2.bf16.msra.mxu0 0
    %500 = vmatprep.subr.bf16.mxu0 0
    %501 = vmatpush2.bf16.msra.mxu0 0
    %502 = vmatprep.subr.bf16.mxu0 0
    %503 = vmatpush2.bf16.msra.mxu0 0
    %504 = vmatprep.subr.bf16.mxu0 0
    %505 = vmatpush2.bf16.msra.mxu0 0
    %506 = vmatprep.subr.bf16.mxu0 0
    %507 = vmatpush2.bf16.msra.mxu0 0
    %508 = vmatprep.mubr.bf16.mxu0 0
    %509 = vmatmul.mubr.bf16.gmra.mxu0 %v274
    %v510 = vpop.f32.mrf.mxu0
    %v511 = vadd.f32 0.0, %v510
    %v512 = vpop.f32.mrf.mxu0
    %v513 = vpop.f32.mrf.mxu0
    %v514 = vpop.f32.mrf.mxu0
    %515 = vdwg.mxu0
    %v516 = vadd.f32 %v228, %v470
    %v517 = vadd.f32 %v230, %v472
    %v518 = vadd.f32 %v269, %v511
    %v519 = vld [vmem:[%s4] sm:$0x7]
    %v521 = vlaneseq
    %v522 = vshrl.u32 %v521, 7
    %v523 = vsub.s32 0, %v522
    %v524 = vrot.slane %v519, %v523
    %v525 = vlaneseq
    %v526 = vshrl.u32 %v525, 7
    %v527 = vsub.s32 1, %v526
    %v528 = vrot.slane %v519, %v527
    %v529 = vlaneseq
    %v530 = vshrl.u32 %v529, 7
    %v531 = vsub.s32 2, %v530
    %v532 = vrot.slane %v519, %v531
    %v536 = vadd.f32 %v516, %v524
    %v537 = vadd.f32 %v517, %v528
    %v538 = vadd.f32 %v518, %v532
    %v542 = vcombine.low %v536, %v537
    %v544 = vunpack.c.l.s4 1983009808
    %v545 = vunpack.c.0.s8 %v544
    %v546 = vlaneseq
    %v547 = vshrl.u32 %v546, 7
    %v548 = vsub.s32 %v545, %v547
    %v549 = vrot.slane %v542, %v548
    %v551 = vunpack.c.l.s4 1983009808
    %v552 = vunpack.c.0.s8 %v551
    %v553 = vlaneseq
    %v554 = vshrl.u32 %v553, 7
    %v555 = vsub.s32 %v552, %v554
    %v556 = vrot.slane %v538, %v555
    %v557 = vcombine.low %v549, %v556
    %559 = vst [vmem:[#allocation2] sm:$0x3f] %v557
    %v560 = vld [vmem:[%s5] sm:$0x7]
    %v562 = vlaneseq
    %v563 = vshrl.u32 %v562, 7
    %v564 = vsub.s32 0, %v563
    %v565 = vrot.slane %v560, %v564
    %v566 = vlaneseq
    %v567 = vshrl.u32 %v566, 7
    %v568 = vsub.s32 1, %v567
    %v569 = vrot.slane %v560, %v568
    %v570 = vlaneseq
    %v571 = vshrl.u32 %v570, 7
    %v572 = vsub.s32 2, %v571
    %v573 = vrot.slane %v560, %v572
    %v577 = vadd.f32 %v228, %v565
    %v578 = vadd.f32 %v230, %v569
    %v579 = vadd.f32 %v269, %v573
    %v583 = vcombine.low %v577, %v578
    %v585 = vunpack.c.l.s4 1983009808
    %v586 = vunpack.c.0.s8 %v585
    %v587 = vlaneseq
    %v588 = vshrl.u32 %v587, 7
    %v589 = vsub.s32 %v586, %v588
    %v590 = vrot.slane %v583, %v589
    %v592 = vunpack.c.l.s4 1983009808
    %v593 = vunpack.c.0.s8 %v592
    %v594 = vlaneseq
    %v595 = vshrl.u32 %v594, 7
    %v596 = vsub.s32 %v593, %v595
    %v597 = vrot.slane %v579, %v596
    %v598 = vcombine.low %v590, %v597
    %600 = vst [vmem:[#allocation4] sm:$0x3f] %v598
    %v601 = vld [vmem:[%s6] sm:$0x7]
    %v603 = vlaneseq
    %v604 = vshrl.u32 %v603, 7
    %v605 = vsub.s32 0, %v604
    %v606 = vrot.slane %v601, %v605
    %v607 = vlaneseq
    %v608 = vshrl.u32 %v607, 7
    %v609 = vsub.s32 1, %v608
    %v610 = vrot.slane %v601, %v609
    %v611 = vlaneseq
    %v612 = vshrl.u32 %v611, 7
    %v613 = vsub.s32 2, %v612
    %v614 = vrot.slane %v601, %v613
    %v618 = vadd.f32 %v470, %v606
    %v619 = vadd.f32 %v472, %v610
    %v620 = vadd.f32 %v511, %v614
    %v624 = vcombine.low %v618, %v619
    %v626 = vunpack.c.l.s4 1983009808
    %v627 = vunpack.c.0.s8 %v626
    %v628 = vlaneseq
    %v629 = vshrl.u32 %v628, 7
    %v630 = vsub.s32 %v627, %v629
    %v631 = vrot.slane %v624, %v630
    %v633 = vunpack.c.l.s4 1983009808
    %v634 = vunpack.c.0.s8 %v633
    %v635 = vlaneseq
    %v636 = vshrl.u32 %v635, 7
    %v637 = vsub.s32 %v634, %v636
    %v638 = vrot.slane %v620, %v637
    %v639 = vcombine.low %v631, %v638
    %641 = vst [vmem:[#allocation6] sm:$0x3f] %v639
    // Predicated region
    $region30: #{cnn_forward.5} parent=1 // pred_check
      _
    $region31: #{cnn_forward.5} parent=1 // pred_check_branch
      %643 = sbr.rel (0) target = $region33
    $region32: #{cnn_forward.5} parent=1 // pred_region
      %s645 = ssub.s32 96, 96
      %646 = vsyncadd [#allocation3], %s645
      %s648 = sshll.u32 [#allocation2], 4
      %s649 = int_to_ptr.vmem [resolvable:$true] %s648
      %651 = dma.vmem_to_hbm [thread:$0]  %s649, 96, %s7, [#allocation3]
    $region33: #{cnn_forward.5} parent=1 // pred_fallthru
      _
    // Predicated region
    $region34: #{cnn_forward.5} parent=1 // pred_check
      _
    $region35: #{cnn_forward.5} parent=1 // pred_check_branch
      %653 = sbr.rel (0) target = $region37
    $region36: #{cnn_forward.5} parent=1 // pred_region
      %s655 = ssub.s32 96, 96
      %656 = vsyncadd [#allocation5], %s655
      %s658 = sshll.u32 [#allocation4], 4
      %s659 = int_to_ptr.vmem [resolvable:$true] %s658
      %661 = dma.vmem_to_hbm [thread:$0]  %s659, 96, %s8, [#allocation5]
    $region37: #{cnn_forward.5} parent=1 // pred_fallthru
      _
    // Predicated region
    $region38: #{cnn_forward.5} parent=1 // pred_check
      _
    $region39: #{cnn_forward.5} parent=1 // pred_check_branch
      %663 = sbr.rel (0) target = $region41
    $region40: #{cnn_forward.5} parent=1 // pred_region
      %s665 = ssub.s32 96, 96
      %666 = vsyncadd [#allocation5], %s665
      %s668 = sshll.u32 [#allocation6], 4
      %s669 = int_to_ptr.vmem [resolvable:$true] %s668
      %671 = dma.vmem_to_hbm [thread:$0]  %s669, 96, %s9, [#allocation5]
    $region41: #{cnn_forward.5} parent=1 // pred_fallthru
      _
    // Predicated region
    $region42: #{cnn_forward.5} parent=1 // pred_check
      _
    $region43: #{cnn_forward.5} parent=1 // pred_check_branch
      %673 = sbr.rel (0) target = $region45
    $region44: #{cnn_forward.5} parent=1 // pred_region
      %674 = dma.done [#allocation3], 96
    $region45: #{cnn_forward.5} parent=1 // pred_fallthru
      _
    // Predicated region
    $region46: #{cnn_forward.5} parent=1 // pred_check
      _
    $region47: #{cnn_forward.5} parent=1 // pred_check_branch
      %676 = sbr.rel (0) target = $region49
    $region48: #{cnn_forward.5} parent=1 // pred_region
      %677 = dma.done [#allocation5], 96
    $region49: #{cnn_forward.5} parent=1 // pred_fallthru
      _
    // Predicated region
    $region50: #{cnn_forward.5} parent=1 // pred_check
      _
    $region51: #{cnn_forward.5} parent=1 // pred_check_branch
      %679 = sbr.rel (0) target = $region53
    $region52: #{cnn_forward.5} parent=1 // pred_region
      %680 = dma.done [#allocation5], 96
    $region53: #{cnn_forward.5} parent=1 // pred_fallthru
      _
    %681 = vsyncpa [#allocation3], 1
    %682 = vsyncpa [#allocation5], 1

</llo_original>
